<compile_context>
chip_gen: v6e
topology: v6e:2x2x1
jax: 0.10.0
libtpu: 0.0.40
codegen_flags: <defaults>
</compile_context>

<pallas_src>
import functools
import math

import jax
import jax.numpy as jnp
from jax.experimental import pallas as pl
from jax.experimental.pallas import tpu as pltpu

F32 = jnp.float32
BF16 = jnp.bfloat16
VMEM = pltpu.MemorySpace.VMEM


# --------------------------------------------------------------------------
# Device helpers
# --------------------------------------------------------------------------
def _device_kind():
    try:
        return jax.devices()[0].device_kind.lower()
    except Exception:
        return ""


def _default_fuse_edge_mlps():
    # Block-diag fwd/bwd edge-MLP fusion makes K = 4*nc + 2*ec (=192 here): one pass on the
    # 256-deep MXU of v6e/v7x, two passes on the 128-deep MXU of v5e and older -> gen-gate.
    kind = _device_kind()
    for old in ("v2", "v3", "v4", "v5"):
        if old in kind:
            return False
    return True


# --------------------------------------------------------------------------
# Small in-kernel helpers
# --------------------------------------------------------------------------
def _relu(h):
    return jnp.maximum(h, 0.0)


def _silu(h):
    return h * jax.nn.sigmoid(h)


def _mlp2(x_bf16, params, act):
    """y = act(x @ W1 + b1) @ W2 + b2 ; W already bf16, bias / accumulation in f32."""
    w1, b1, w2, b2 = params
    h = jnp.dot(x_bf16, w1[...], preferred_element_type=F32) + b1[...]
    h = act(h)
    return jnp.dot(h.astype(BF16), w2[...], preferred_element_type=F32) + b2[...]


# --------------------------------------------------------------------------
# Fused QGNN forward kernel (whole forward pass, everything VMEM-resident)
# --------------------------------------------------------------------------
def _qgnn_fused_kernel(*refs, num_layers, fuse_edge):
    it = iter(refs)
    sendrecv_ref = next(it)    # [2E, 1] int32  : [senders ; receivers]
    recv_row_ref = next(it)    # [1, E]  int32
    batch_row_ref = next(it)   # [1, N]  int32
    batch_col_ref = next(it)   # [N, 1]  int32
    pbc_row_ref = next(it)     # [1, G]  f32
    xn_ref = next(it)          # [N, node_in] f32 (raw, pbc column added in-kernel)
    xe_ref = next(it)          # [E, edge_in] f32 (raw, pbc column added in-kernel)

    def take_mlp():
        return (next(it), next(it), next(it), next(it))

    embed_nodes = take_mlp()
    embed_edges = take_mlp()
    if fuse_edge:
        layer_params = [(take_mlp(), take_mlp()) for _ in range(num_layers)]
    else:
        layer_params = [(take_mlp(), take_mlp(), take_mlp()) for _ in range(num_layers)]
    node_readout = take_mlp()
    edge_readout = take_mlp()
    global_readout = take_mlp()

    nodes_out_ref = next(it)   # [N, node_out]
    edges_out_ref = next(it)   # [E, edge_out]
    global_out_ref = next(it)  # [G, global_out]

    E = xe_ref.shape[0]
    N = xn_ref.shape[0]
    G = global_out_ref.shape[0]

    # --- one-hot gather / scatter / pool matrices (built ONCE) ---------------------------
    node_ids_2en = jax.lax.broadcasted_iota(jnp.int32, (2 * E, N), 1)
    SR = (sendrecv_ref[...] == node_ids_2en).astype(BF16)        # [2E, N] rows 0:E=sender, E:2E=receiver
    node_ids_ne = jax.lax.broadcasted_iota(jnp.int32, (N, E), 0)
    RT = (recv_row_ref[...] == node_ids_ne).astype(BF16)         # [N, E]  scatter-add (pre-transposed)
    graph_ids_gn = jax.lax.broadcasted_iota(jnp.int32, (G, N), 0)
    MT = (batch_row_ref[...] == graph_ids_gn).astype(BF16)       # [G, N]  global_add_pool
    graph_ids_ng = jax.lax.broadcasted_iota(jnp.int32, (N, G), 1)
    NG = (batch_col_ref[...] == graph_ids_ng).astype(F32)        # [N, G]  node -> graph (pbc)

    # --- PBC features built in-kernel (no wrapper gathers / concats) ---------------------
    node_pbc = jnp.sum(NG * pbc_row_ref[...], axis=1, keepdims=True)                 # [N, 1]
    edge_pbc = jnp.dot(SR, node_pbc.astype(BF16), preferred_element_type=F32)[:E]    # [E, 1]

    xn_in = jnp.concatenate([xn_ref[...], node_pbc], axis=1).astype(BF16)
    xe_in = jnp.concatenate([xe_ref[...], edge_pbc], axis=1).astype(BF16)

    # --- embeddings -----------------------------------------------------------------------
    xe = _mlp2(xe_in, embed_edges, _silu)                        # [E, ec] f32
    xn = _mlp2(xn_in, embed_nodes, _silu)                        # [N, nc] f32

    ef = xe
    eb = xe
    e_cat = jnp.concatenate([xe, xe], axis=1)                    # [E, 2*ec] == [ef | eb]

    # --- message-passing layers (statically unrolled) --------------------------------------
    for l in range(num_layers):
        xn_bf = xn.astype(BF16)
        # one fused gather dot: rows 0:E = x_nodes[sender], rows E:2E = x_nodes[receiver]
        g = jnp.dot(SR, xn_bf, preferred_element_type=F32)       # [2E, nc]
        xs = g[:E]
        xr = g[E:]

        if fuse_edge:
            p_edge, p_node = layer_params[l]
            # fused fwd/bwd edge MLP; fused-W1 input layout [xs | xr | xr | xs | ef | eb]
            state_cat = jnp.concatenate([xs, xr, xr, xs, e_cat], axis=1).astype(BF16)
            e_cat = _mlp2(state_cat, p_edge, _relu)              # [E, 2*ec] == [ef_new | eb_new]
        else:
            p_fwd, p_bwd, p_node = layer_params[l]
            state_f = jnp.concatenate([xs, xr, ef], axis=1).astype(BF16)
            state_b = jnp.concatenate([xr, xs, eb], axis=1).astype(BF16)
            ef = _mlp2(state_f, p_fwd, _relu)                    # [E, ec]
            eb = _mlp2(state_b, p_bwd, _relu)                    # [E, ec]
            e_cat = jnp.concatenate([ef, eb], axis=1)

        # one fused scatter-add dot over [ef | eb] (no XLU transpose: RT built transposed)
        aggr = jnp.dot(RT, e_cat.astype(BF16), preferred_element_type=F32)   # [N, 2*ec]
        node_state = jnp.concatenate([xn, aggr], axis=1).astype(BF16)
        xn = _mlp2(node_state, p_node, _relu)                    # [N, nc]

    # --- readouts ---------------------------------------------------------------------------
    xn_out = _mlp2(xn.astype(BF16), node_readout, _silu)                       # [N, node_out]
    xe_out = _mlp2(e_cat.astype(BF16), edge_readout, _silu)                    # [E, edge_out]
    x_pool = jnp.dot(MT, xn_out.astype(BF16), preferred_element_type=F32)      # [G, node_out]
    x_glob = _mlp2(x_pool.astype(BF16), global_readout, _silu)                 # [G, global_out]

    nodes_out_ref[...] = xn_out
    edges_out_ref[...] = xe_out
    global_out_ref[...] = x_glob


# --------------------------------------------------------------------------
# One-time parameter preparation (outside the hot path)
# --------------------------------------------------------------------------
def _fuse_edge_mlp_weights(p_fwd, p_bwd):
    """Block-diagonal fusion of one layer's fwd/bwd edge MLPs.

    Fused first-layer input layout: [xs | xr | xr | xs | ef | eb] so the kernel can feed the
    already-concatenated [ef | eb] activation directly.  Fused outputs are [fwd | bwd]
    (== the e_cat layout consumed by scatter-add and the edge readout)."""
    w1f, b1f, w2f, b2f = (jnp.asarray(a, F32) for a in p_fwd)
    w1b, b1b, w2b, b2b = (jnp.asarray(a, F32) for a in p_bwd)
    ec = w1f.shape[1]
    nc = (w1f.shape[0] - ec) // 2
    zn = jnp.zeros((nc, ec), F32)
    ze = jnp.zeros((ec, ec), F32)
    w1 = jnp.concatenate([
        jnp.concatenate([w1f[0:nc],          zn], axis=1),   # xs -> fwd
        jnp.concatenate([w1f[nc:2 * nc],     zn], axis=1),   # xr -> fwd
        jnp.concatenate([zn, w1b[0:nc]],          axis=1),   # xr -> bwd
        jnp.concatenate([zn, w1b[nc:2 * nc]],     axis=1),   # xs -> bwd
        jnp.concatenate([w1f[2 * nc:],       ze], axis=1),   # ef -> fwd
        jnp.concatenate([ze, w1b[2 * nc:]],       axis=1),   # eb -> bwd
    ], axis=0)                                               # [4*nc + 2*ec, 2*ec]
    b1 = jnp.concatenate([b1f, b1b], axis=1)
    w2 = jnp.concatenate([
        jnp.concatenate([w2f, ze], axis=1),
        jnp.concatenate([ze, w2b], axis=1),
    ], axis=0)                                               # [2*ec, 2*ec]
    b2 = jnp.concatenate([b2f, b2b], axis=1)
    return (w1, b1, w2, b2)


def prepare_params(params, fuse_edge_mlps=None):
    """One-time conversion: weights -> bf16 (biases f32), optional fwd/bwd block-diag fusion.
    Doing this once here means the jitted forward launches no per-call weight converts."""
    if fuse_edge_mlps is None:
        fuse_edge_mlps = _default_fuse_edge_mlps()

    def cast(p):
        w1, b1, w2, b2 = p
        return (jnp.asarray(w1, BF16), jnp.asarray(b1, F32),
                jnp.asarray(w2, BF16), jnp.asarray(b2, F32))

    prepared = {
        "embed_nodes": cast(params["embed_nodes"]),
        "embed_edges": cast(params["embed_edges"]),
        "node_readout": cast(params["node_readout"]),
        "edge_readout": cast(params["edge_readout"]),
        "global_readout": cast(params["global_readout"]),
        "layers": [],
    }
    for lp in params["layers"]:
        if fuse_edge_mlps:
            prepared["layers"].append({
                "edge_fused": cast(_fuse_edge_mlp_weights(lp["edge_fwd"], lp["edge_bwd"])),
                "node": cast(lp["node"]),
            })
        else:
            prepared["layers"].append({
                "edge_fwd": cast(lp["edge_fwd"]),
                "edge_bwd": cast(lp["edge_bwd"]),
                "node": cast(lp["node"]),
            })
    return prepared


# --------------------------------------------------------------------------
# Wrapper
# --------------------------------------------------------------------------
@functools.partial(jax.jit, static_argnames=("num_graphs",))
def qgnn_forward(prepared_params, x_nodes_in, x_edges_in, edge_index, batch, pbc, *, num_graphs):
    """use_pbc=True forward pass.  `prepared_params` must come from prepare_params(...)."""
    layers = prepared_params["layers"]
    num_layers = len(layers)
    fuse_edge = bool(num_layers) and ("edge_fused" in layers[0])

    N, node_in = x_nodes_in.shape
    E, edge_in = x_edges_in.shape
    G = num_graphs

    # Index plumbing only (tiny int reshapes); pbc gathers & feature concats happen in-kernel.
    sendrecv_col = edge_index.astype(jnp.int32).reshape(2 * E, 1)   # [senders ; receivers]
    recv_row = edge_index[1:2].astype(jnp.int32)                    # [1, E]
    batch_i32 = batch.astype(jnp.int32)
    batch_row = batch_i32.reshape(1, N)
    batch_col = batch_i32.reshape(N, 1)
    pbc_row = pbc.astype(F32).reshape(1, G)

    flat_w = []
    flat_w += list(prepared_params["embed_nodes"])
    flat_w += list(prepared_params["embed_edges"])
    for lp in layers:
        if fuse_edge:
            flat_w += list(lp["edge_fused"])
        else:
            flat_w += list(lp["edge_fwd"]) + list(lp["edge_bwd"])
        flat_w += list(lp["node"])
    flat_w += list(prepared_params["node_readout"])
    flat_w += list(prepared_params["edge_readout"])
    flat_w += list(prepared_params["global_readout"])

    nc = prepared_params["embed_nodes"][2].shape[1]
    ec = prepared_params["embed_edges"][2].shape[1]
    node_out = prepared_params["node_readout"][2].shape[1]
    edge_out = prepared_params["edge_readout"][2].shape[1]
    global_out = prepared_params["global_readout"][2].shape[1]

    args = (sendrecv_col, recv_row, batch_row, batch_col, pbc_row,
            x_nodes_in.astype(F32), x_edges_in.astype(F32), *flat_w)
    out_shapes = (
        jax.ShapeDtypeStruct((N, node_out), F32),
        jax.ShapeDtypeStruct((E, edge_out), F32),
        jax.ShapeDtypeStruct((G, global_out), F32),
    )

    # --- cost estimate (advisory; lets XLA schedule around the custom call) -----------------
    def mm(m, k, n):
        return 2 * m * k * n

    flops = mm(2 * E, N, 1)                                        # edge-pbc gather
    flops += mm(E, edge_in + 1, ec) + mm(E, ec, ec)                # embed edges
    flops += mm(N, node_in + 1, nc) + mm(N, nc, nc)                # embed nodes
    for _ in range(num_layers):
        flops += mm(2 * E, N, nc)                                  # fused sender/receiver gather
        if fuse_edge:
            flops += mm(E, 4 * nc + 2 * ec, 2 * ec) + mm(E, 2 * ec, 2 * ec)
        else:
            flops += 2 * (mm(E, 2 * nc + ec, ec) + mm(E, ec, ec))
        flops += mm(N, E, 2 * ec)                                  # fused scatter-add
        flops += mm(N, nc + 2 * ec, nc) + mm(N, nc, nc)            # node MLP
    flops += mm(N, nc, nc) + mm(N, nc, node_out)                   # node readout
    flops += mm(E, 2 * ec, ec) + mm(E, ec, edge_out)               # edge readout
    flops += mm(G, N, node_out)                                    # global_add_pool
    flops += mm(G, node_out, nc) + mm(G, nc, global_out)           # global readout
    transcendentals = 2 * N * nc + 2 * E * ec + G * nc             # one sigmoid per SiLU unit

    io_bytes = sum(int(math.prod(a.shape)) * jnp.dtype(a.dtype).itemsize for a in args)
    io_bytes += sum(int(math.prod(s.shape)) * jnp.dtype(s.dtype).itemsize for s in out_shapes)

    # --- explicit scoped-VMEM budget (defaults: 16 MiB v5e / 32 MiB v6e,v7x) ----------------
    onehot_bytes = 2 * (2 * E * N + N * E + G * N) + 4 * N * G
    act_bytes = 16 * (E * (4 * nc + 2 * ec) + N * (nc + 2 * ec))
    est = onehot_bytes + act_bytes + io_bytes
    cap = (60 << 20) if "v7" in _device_kind() else (100 << 20)
    vmem_limit = int(min(cap, max(32 << 20, 2 * est)))

    xn_out, xe_out, x_glob = pl.pallas_call(
        functools.partial(_qgnn_fused_kernel, num_layers=num_layers, fuse_edge=fuse_edge),
        out_shape=out_shapes,
        in_specs=[pl.BlockSpec(memory_space=VMEM) for _ in range(len(args))],
        out_specs=tuple(pl.BlockSpec(memory_space=VMEM) for _ in range(3)),
        compiler_params=pltpu.CompilerParams(vmem_limit_bytes=vmem_limit),
        cost_estimate=pl.CostEstimate(flops=flops, transcendentals=transcendentals,
                                      bytes_accessed=io_bytes),
    )(*args)

    # torch.squeeze semantics (drops ALL unit dims) -- mirrors the reference module exactly.
    return jnp.squeeze(xn_out), jnp.squeeze(xe_out), jnp.squeeze(x_glob)


# --------------------------------------------------------------------------
# Pure-JAX f32 reference (for tolerance checking the bf16 kernel)
# --------------------------------------------------------------------------
def _mlp_ref(x, p, act):
    w1, b1, w2, b2 = p
    return jnp.dot(act(jnp.dot(x, w1) + b1), w2) + b2


def qgnn_reference(params, x_nodes_in, x_edges_in, edge_index, batch, pbc, *, num_graphs):
    sender, receiver = edge_index[0], edge_index[1]
    node_pbc = pbc[batch][:, None]
    edge_pbc = pbc[batch[sender]][:, None]
    xn = jnp.concatenate([x_nodes_in, node_pbc], axis=1)
    xe = jnp.concatenate([x_edges_in, edge_pbc], axis=1)
    xe = _mlp_ref(xe, params["embed_edges"], jax.nn.silu)
    xn = _mlp_ref(xn, params["embed_nodes"], jax.nn.silu)
    ef, eb = xe, xe
    for lp in params["layers"]:
        xs, xr = xn[sender], xn[receiver]
        ef_n = _mlp_ref(jnp.concatenate([xs, xr, ef], 1), lp["edge_fwd"], jax.nn.relu)
        eb_n = _mlp_ref(jnp.concatenate([xr, xs, eb], 1), lp["edge_bwd"], jax.nn.relu)
        e_cat = jnp.concatenate([ef_n, eb_n], 1)
        aggr = jnp.zeros((xn.shape[0], e_cat.shape[1]), F32).at[receiver].add(e_cat)
        xn = _mlp_ref(jnp.concatenate([xn, aggr], 1), lp["node"], jax.nn.relu)
        ef, eb = ef_n, eb_n
    xn_out = _mlp_ref(xn, params["node_readout"], jax.nn.silu)
    xe_out = _mlp_ref(jnp.concatenate([ef, eb], 1), params["edge_readout"], jax.nn.silu)
    pool = jnp.zeros((num_graphs, xn_out.shape[1]), F32).at[batch].add(xn_out)
    xg = _mlp_ref(pool, params["global_readout"], jax.nn.silu)
    return jnp.squeeze(xn_out), jnp.squeeze(xe_out), jnp.squeeze(xg)


# --------------------------------------------------------------------------
# Parameter init (deterministic; PyTorch-Linear-style uniform(-1/sqrt(fan_in), +))
# Weights stored as [in, out] (== torch weight.T); biases as [1, out].
# --------------------------------------------------------------------------
def init_linear(key, fan_in, fan_out):
    kw, kb = jax.random.split(key)
    bound = 1.0 / math.sqrt(fan_in)
    w = jax.random.uniform(kw, (fan_in, fan_out), F32, -bound, bound)
    b = jax.random.uniform(kb, (1, fan_out), F32, -bound, bound)
    return w, b


def init_mlp(key, d_in, d_hid, d_out):
    k1, k2 = jax.random.split(key)
    w1, b1 = init_linear(k1, d_in, d_hid)
    w2, b2 = init_linear(k2, d_hid, d_out)
    return (w1, b1, w2, b2)


def init_qgnn_params(key, node_in, nc, node_out, edge_in, ec, edge_out,
                     num_layers, global_out, use_pbc=True):
    keys = jax.random.split(key, 6 + num_layers)
    extra = 1 if use_pbc else 0
    params = {
        "embed_nodes": init_mlp(keys[0], node_in + extra, nc, nc),
        "embed_edges": init_mlp(keys[1], edge_in + extra, ec, ec),
        "node_readout": init_mlp(keys[2], nc, nc, node_out),
        "edge_readout": init_mlp(keys[3], 2 * ec, ec, edge_out),
        "global_readout": init_mlp(keys[4], node_out, nc, global_out),
        "layers": [],
    }
    for l in range(num_layers):
        k1, k2, k3 = jax.random.split(keys[5 + l], 3)
        params["layers"].append({
            "edge_fwd": init_mlp(k1, 2 * nc + ec, ec, ec),
            "edge_bwd": init_mlp(k2, 2 * nc + ec, ec, ec),
            "node":     init_mlp(k3, nc + 2 * ec, nc, nc),
        })
    return params


# --------------------------------------------------------------------------
if __name__ == "__main__":
    # model hyper-params (small, consistent with the module)
    NODE_IN, NODE_CH, NODE_OUT = 4, 32, 3
    EDGE_IN, EDGE_CH, EDGE_OUT = 5, 32, 2
    NUM_LAYERS, GLOBAL_OUT = 2, 1

    # graph data: 2 graphs, 8 nodes each, 12 edges each
    N, E, G = 16, 24, 2
    key = jax.random.PRNGKey(0)
    k_nodes, k_edges, k_s0, k_r0, k_s1, k_r1, k_pbc, k_params = jax.random.split(key, 8)

    x_nodes = jax.random.normal(k_nodes, (N, NODE_IN), F32)
    x_edges = jax.random.normal(k_edges, (E, EDGE_IN), F32)

    s0 = jax.random.randint(k_s0, (E // 2,), 0, 8)
    r0 = jax.random.randint(k_r0, (E // 2,), 0, 8)
    s1 = jax.random.randint(k_s1, (E // 2,), 8, 16)
    r1 = jax.random.randint(k_r1, (E // 2,), 8, 16)
    edge_index = jnp.stack([jnp.concatenate([s0, s1]),
                            jnp.concatenate([r0, r1])]).astype(jnp.int32)       # [2, E]
    batch = jnp.concatenate([jnp.zeros(8, jnp.int32), jnp.ones(8, jnp.int32)])  # [N]
    pbc = jax.random.uniform(k_pbc, (G,), F32)                                  # per-graph

    params = init_qgnn_params(k_params, NODE_IN, NODE_CH, NODE_OUT,
                              EDGE_IN, EDGE_CH, EDGE_OUT,
                              NUM_LAYERS, GLOBAL_OUT, use_pbc=True)

    # one-time weight prep (bf16 cast + gen-gated fwd/bwd block-diag fusion), outside jit
    prepared = prepare_params(params)

    out_nodes, out_edges, out_global = qgnn_forward(
        prepared, x_nodes, x_edges, edge_index, batch, pbc, num_graphs=G)
    jax.block_until_ready((out_nodes, out_edges, out_global))

    assert out_nodes.shape == (N, NODE_OUT)
    assert out_edges.shape == (E, EDGE_OUT)
    assert out_global.shape == (G,)   # [G, 1] squeezed (torch.squeeze semantics)

    # tolerance check vs. pure-JAX f32 reference (bf16 MXU math inside the kernel)
    ref_nodes, ref_edges, ref_global = qgnn_reference(
        params, x_nodes, x_edges, edge_index, batch, pbc, num_graphs=G)
    for got, ref in ((out_nodes, ref_nodes), (out_edges, ref_edges), (out_global, ref_global)):
        assert got.shape == ref.shape
        assert jnp.allclose(got, ref, atol=7e-2, rtol=7e-2), \
            float(jnp.max(jnp.abs(got - ref)))

    print("KERNEL_OK")
</pallas_src>

<mosaic_0001>
module attributes {stable_mosaic.version = 11 : i64} {
  func.func @_qgnn_fused_kernel(%arg0: memref<48x1xi32, #tpu.memory_space<vmem>>, %arg1: memref<1x24xi32, #tpu.memory_space<vmem>>, %arg2: memref<1x16xi32, #tpu.memory_space<vmem>>, %arg3: memref<16x1xi32, #tpu.memory_space<vmem>>, %arg4: memref<1x2xf32, #tpu.memory_space<vmem>>, %arg5: memref<16x4xf32, #tpu.memory_space<vmem>>, %arg6: memref<24x5xf32, #tpu.memory_space<vmem>>, %arg7: memref<5x32xbf16, #tpu.memory_space<vmem>>, %arg8: memref<1x32xf32, #tpu.memory_space<vmem>>, %arg9: memref<32x32xbf16, #tpu.memory_space<vmem>>, %arg10: memref<1x32xf32, #tpu.memory_space<vmem>>, %arg11: memref<6x32xbf16, #tpu.memory_space<vmem>>, %arg12: memref<1x32xf32, #tpu.memory_space<vmem>>, %arg13: memref<32x32xbf16, #tpu.memory_space<vmem>>, %arg14: memref<1x32xf32, #tpu.memory_space<vmem>>, %arg15: memref<192x64xbf16, #tpu.memory_space<vmem>>, %arg16: memref<1x64xf32, #tpu.memory_space<vmem>>, %arg17: memref<64x64xbf16, #tpu.memory_space<vmem>>, %arg18: memref<1x64xf32, #tpu.memory_space<vmem>>, %arg19: memref<96x32xbf16, #tpu.memory_space<vmem>>, %arg20: memref<1x32xf32, #tpu.memory_space<vmem>>, %arg21: memref<32x32xbf16, #tpu.memory_space<vmem>>, %arg22: memref<1x32xf32, #tpu.memory_space<vmem>>, %arg23: memref<192x64xbf16, #tpu.memory_space<vmem>>, %arg24: memref<1x64xf32, #tpu.memory_space<vmem>>, %arg25: memref<64x64xbf16, #tpu.memory_space<vmem>>, %arg26: memref<1x64xf32, #tpu.memory_space<vmem>>, %arg27: memref<96x32xbf16, #tpu.memory_space<vmem>>, %arg28: memref<1x32xf32, #tpu.memory_space<vmem>>, %arg29: memref<32x32xbf16, #tpu.memory_space<vmem>>, %arg30: memref<1x32xf32, #tpu.memory_space<vmem>>, %arg31: memref<32x32xbf16, #tpu.memory_space<vmem>>, %arg32: memref<1x32xf32, #tpu.memory_space<vmem>>, %arg33: memref<32x3xbf16, #tpu.memory_space<vmem>>, %arg34: memref<1x3xf32, #tpu.memory_space<vmem>>, %arg35: memref<64x32xbf16, #tpu.memory_space<vmem>>, %arg36: memref<1x32xf32, #tpu.memory_space<vmem>>, %arg37: memref<32x2xbf16, #tpu.memory_space<vmem>>, %arg38: memref<1x2xf32, #tpu.memory_space<vmem>>, %arg39: memref<3x32xbf16, #tpu.memory_space<vmem>>, %arg40: memref<1x32xf32, #tpu.memory_space<vmem>>, %arg41: memref<32x1xbf16, #tpu.memory_space<vmem>>, %arg42: memref<1x1xf32, #tpu.memory_space<vmem>>, %arg43: memref<16x3xf32, #tpu.memory_space<vmem>>, %arg44: memref<24x2xf32, #tpu.memory_space<vmem>>, %arg45: memref<2x1xf32, #tpu.memory_space<vmem>>) attributes {dimension_semantics = [], scalar_prefetch = 0 : i64, scratch_operands = 0 : i64, tpu.core_type = #tpu.core_type<tc>} {
    %0 = tpu.iota {dimensions = array<i32: 1>} : vector<48x16xi32>
    %c0 = arith.constant 0 : index
    %c0_0 = arith.constant 0 : index
    %1 = vector.load %arg0[%c0, %c0_0] : memref<48x1xi32, #tpu.memory_space<vmem>>, vector<48x1xi32>
    %2 = vector.broadcast %1 : vector<48x1xi32> to vector<48x16xi32>
    %3 = arith.cmpi eq, %2, %0 : vector<48x16xi32>
    %4 = arith.extui %3 : vector<48x16xi1> to vector<48x16xi32>
    %5 = arith.sitofp %4 : vector<48x16xi32> to vector<48x16xf32>
    %6 = arith.truncf %5 : vector<48x16xf32> to vector<48x16xbf16>
    %7 = tpu.iota {dimensions = array<i32: 0>} : vector<16x24xi32>
    %c0_1 = arith.constant 0 : index
    %c0_2 = arith.constant 0 : index
    %8 = vector.load %arg1[%c0_1, %c0_2] : memref<1x24xi32, #tpu.memory_space<vmem>>, vector<1x24xi32>
    %9 = vector.broadcast %8 : vector<1x24xi32> to vector<16x24xi32>
    %10 = arith.cmpi eq, %9, %7 : vector<16x24xi32>
    %11 = arith.extui %10 : vector<16x24xi1> to vector<16x24xi32>
    %12 = arith.sitofp %11 : vector<16x24xi32> to vector<16x24xf32>
    %13 = arith.truncf %12 : vector<16x24xf32> to vector<16x24xbf16>
    %14 = tpu.iota {dimensions = array<i32: 0>} : vector<2x16xi32>
    %c0_3 = arith.constant 0 : index
    %c0_4 = arith.constant 0 : index
    %15 = vector.load %arg2[%c0_3, %c0_4] : memref<1x16xi32, #tpu.memory_space<vmem>>, vector<1x16xi32>
    %16 = vector.broadcast %15 : vector<1x16xi32> to vector<2x16xi32>
    %17 = arith.cmpi eq, %16, %14 : vector<2x16xi32>
    %18 = arith.extui %17 : vector<2x16xi1> to vector<2x16xi32>
    %19 = arith.sitofp %18 : vector<2x16xi32> to vector<2x16xf32>
    %20 = arith.truncf %19 : vector<2x16xf32> to vector<2x16xbf16>
    %21 = tpu.iota {dimensions = array<i32: 1>} : vector<16x2xi32>
    %c0_5 = arith.constant 0 : index
    %c0_6 = arith.constant 0 : index
    %22 = vector.load %arg3[%c0_5, %c0_6] : memref<16x1xi32, #tpu.memory_space<vmem>>, vector<16x1xi32>
    %23 = vector.broadcast %22 : vector<16x1xi32> to vector<16x2xi32>
    %24 = arith.cmpi eq, %23, %21 : vector<16x2xi32>
    %25 = arith.extui %24 : vector<16x2xi1> to vector<16x2xi32>
    %26 = arith.sitofp %25 : vector<16x2xi32> to vector<16x2xf32>
    %c0_7 = arith.constant 0 : index
    %c0_8 = arith.constant 0 : index
    %27 = vector.load %arg4[%c0_7, %c0_8] : memref<1x2xf32, #tpu.memory_space<vmem>>, vector<1x2xf32>
    %28 = vector.broadcast %27 : vector<1x2xf32> to vector<16x2xf32>
    %29 = arith.mulf %26, %28 : vector<16x2xf32>
    %cst = arith.constant dense<0.000000e+00> : vector<16xf32>
    %30 = vector.multi_reduction <add>, %29, %cst [1] : vector<16x2xf32> to vector<16xf32>
    %31 = vector.shape_cast %30 : vector<16xf32> to vector<16x1xf32>
    %32 = arith.truncf %31 : vector<16x1xf32> to vector<16x1xbf16>
    %cst_9 = arith.constant dense<0.000000e+00> : vector<48x1xf32>
    %33 = tpu.matmul %6, %32, %cst_9 {dimension_numbers = #tpu.dot_dimension_numbers<[1], [0], [0], [1], [0, 0, 1, 1], [], []>} : vector<48x16xbf16>, vector<16x1xbf16>, vector<48x1xf32> -> vector<48x1xf32>
    %34 = vector.extract_strided_slice %33 {offsets = [0, 0], sizes = [24, 1], strides = [1, 1]} : vector<48x1xf32> to vector<24x1xf32>
    %c0_10 = arith.constant 0 : index
    %c0_11 = arith.constant 0 : index
    %35 = vector.load %arg5[%c0_10, %c0_11] : memref<16x4xf32, #tpu.memory_space<vmem>>, vector<16x4xf32>
    %36 = tpu.concatenate %35, %31 in 1 : vector<16x4xf32>, vector<16x1xf32> -> vector<16x5xf32>
    %37 = arith.truncf %36 : vector<16x5xf32> to vector<16x5xbf16>
    %c0_12 = arith.constant 0 : index
    %c0_13 = arith.constant 0 : index
    %38 = vector.load %arg6[%c0_12, %c0_13] : memref<24x5xf32, #tpu.memory_space<vmem>>, vector<24x5xf32>
    %39 = tpu.concatenate %38, %34 in 1 : vector<24x5xf32>, vector<24x1xf32> -> vector<24x6xf32>
    %40 = arith.truncf %39 : vector<24x6xf32> to vector<24x6xbf16>
    %c0_14 = arith.constant 0 : index
    %c0_15 = arith.constant 0 : index
    %41 = vector.load %arg11[%c0_14, %c0_15] : memref<6x32xbf16, #tpu.memory_space<vmem>>, vector<6x32xbf16>
    %cst_16 = arith.constant dense<0.000000e+00> : vector<24x32xf32>
    %42 = tpu.matmul %40, %41, %cst_16 {dimension_numbers = #tpu.dot_dimension_numbers<[1], [0], [0], [1], [0, 0, 1, 1], [], []>} : vector<24x6xbf16>, vector<6x32xbf16>, vector<24x32xf32> -> vector<24x32xf32>
    %c0_17 = arith.constant 0 : index
    %c0_18 = arith.constant 0 : index
    %43 = vector.load %arg12[%c0_17, %c0_18] : memref<1x32xf32, #tpu.memory_space<vmem>>, vector<1x32xf32>
    %44 = vector.broadcast %43 : vector<1x32xf32> to vector<24x32xf32>
    %45 = arith.addf %42, %44 : vector<24x32xf32>
    %46 = arith.negf %45 : vector<24x32xf32>
    %47 = math.exp %46 : vector<24x32xf32>
    %cst_19 = arith.constant 1.000000e+00 : f32
    %48 = vector.broadcast %cst_19 : f32 to vector<24x32xf32>
    %49 = arith.addf %48, %47 : vector<24x32xf32>
    %50 = arith.divf %48, %49 : vector<24x32xf32>
    %51 = arith.mulf %45, %50 : vector<24x32xf32>
    %52 = arith.truncf %51 : vector<24x32xf32> to vector<24x32xbf16>
    %c0_20 = arith.constant 0 : index
    %c0_21 = arith.constant 0 : index
    %53 = vector.load %arg13[%c0_20, %c0_21] : memref<32x32xbf16, #tpu.memory_space<vmem>>, vector<32x32xbf16>
    %cst_22 = arith.constant dense<0.000000e+00> : vector<24x32xf32>
    %54 = tpu.matmul %52, %53, %cst_22 {dimension_numbers = #tpu.dot_dimension_numbers<[1], [0], [0], [1], [0, 0, 1, 1], [], []>} : vector<24x32xbf16>, vector<32x32xbf16>, vector<24x32xf32> -> vector<24x32xf32>
    %c0_23 = arith.constant 0 : index
    %c0_24 = arith.constant 0 : index
    %55 = vector.load %arg14[%c0_23, %c0_24] : memref<1x32xf32, #tpu.memory_space<vmem>>, vector<1x32xf32>
    %56 = vector.broadcast %55 : vector<1x32xf32> to vector<24x32xf32>
    %57 = arith.addf %54, %56 : vector<24x32xf32>
    %c0_25 = arith.constant 0 : index
    %c0_26 = arith.constant 0 : index
    %58 = vector.load %arg7[%c0_25, %c0_26] : memref<5x32xbf16, #tpu.memory_space<vmem>>, vector<5x32xbf16>
    %cst_27 = arith.constant dense<0.000000e+00> : vector<16x32xf32>
    %59 = tpu.matmul %37, %58, %cst_27 {dimension_numbers = #tpu.dot_dimension_numbers<[1], [0], [0], [1], [0, 0, 1, 1], [], []>} : vector<16x5xbf16>, vector<5x32xbf16>, vector<16x32xf32> -> vector<16x32xf32>
    %c0_28 = arith.constant 0 : index
    %c0_29 = arith.constant 0 : index
    %60 = vector.load %arg8[%c0_28, %c0_29] : memref<1x32xf32, #tpu.memory_space<vmem>>, vector<1x32xf32>
    %61 = vector.broadcast %60 : vector<1x32xf32> to vector<16x32xf32>
    %62 = arith.addf %59, %61 : vector<16x32xf32>
    %63 = arith.negf %62 : vector<16x32xf32>
    %64 = math.exp %63 : vector<16x32xf32>
    %cst_30 = arith.constant 1.000000e+00 : f32
    %65 = vector.broadcast %cst_30 : f32 to vector<16x32xf32>
    %66 = arith.addf %65, %64 : vector<16x32xf32>
    %67 = arith.divf %65, %66 : vector<16x32xf32>
    %68 = arith.mulf %62, %67 : vector<16x32xf32>
    %69 = arith.truncf %68 : vector<16x32xf32> to vector<16x32xbf16>
    %c0_31 = arith.constant 0 : index
    %c0_32 = arith.constant 0 : index
    %70 = vector.load %arg9[%c0_31, %c0_32] : memref<32x32xbf16, #tpu.memory_space<vmem>>, vector<32x32xbf16>
    %cst_33 = arith.constant dense<0.000000e+00> : vector<16x32xf32>
    %71 = tpu.matmul %69, %70, %cst_33 {dimension_numbers = #tpu.dot_dimension_numbers<[1], [0], [0], [1], [0, 0, 1, 1], [], []>} : vector<16x32xbf16>, vector<32x32xbf16>, vector<16x32xf32> -> vector<16x32xf32>
    %c0_34 = arith.constant 0 : index
    %c0_35 = arith.constant 0 : index
    %72 = vector.load %arg10[%c0_34, %c0_35] : memref<1x32xf32, #tpu.memory_space<vmem>>, vector<1x32xf32>
    %73 = vector.broadcast %72 : vector<1x32xf32> to vector<16x32xf32>
    %74 = arith.addf %71, %73 : vector<16x32xf32>
    %75 = tpu.concatenate %57, %57 in 1 : vector<24x32xf32>, vector<24x32xf32> -> vector<24x64xf32>
    %76 = arith.truncf %74 : vector<16x32xf32> to vector<16x32xbf16>
    %cst_36 = arith.constant dense<0.000000e+00> : vector<48x32xf32>
    %77 = tpu.matmul %6, %76, %cst_36 {dimension_numbers = #tpu.dot_dimension_numbers<[1], [0], [0], [1], [0, 0, 1, 1], [], []>} : vector<48x16xbf16>, vector<16x32xbf16>, vector<48x32xf32> -> vector<48x32xf32>
    %78 = vector.extract_strided_slice %77 {offsets = [0, 0], sizes = [24, 32], strides = [1, 1]} : vector<48x32xf32> to vector<24x32xf32>
    %79 = vector.extract_strided_slice %77 {offsets = [24, 0], sizes = [24, 32], strides = [1, 1]} : vector<48x32xf32> to vector<24x32xf32>
    %80 = tpu.concatenate %78, %79, %79, %78, %75 in 1 : vector<24x32xf32>, vector<24x32xf32>, vector<24x32xf32>, vector<24x32xf32>, vector<24x64xf32> -> vector<24x192xf32>
    %81 = arith.truncf %80 : vector<24x192xf32> to vector<24x192xbf16>
    %c0_37 = arith.constant 0 : index
    %c0_38 = arith.constant 0 : index
    %82 = vector.load %arg15[%c0_37, %c0_38] : memref<192x64xbf16, #tpu.memory_space<vmem>>, vector<192x64xbf16>
    %cst_39 = arith.constant dense<0.000000e+00> : vector<24x64xf32>
    %83 = tpu.matmul %81, %82, %cst_39 {dimension_numbers = #tpu.dot_dimension_numbers<[1], [0], [0], [1], [0, 0, 1, 1], [], []>} : vector<24x192xbf16>, vector<192x64xbf16>, vector<24x64xf32> -> vector<24x64xf32>
    %c0_40 = arith.constant 0 : index
    %c0_41 = arith.constant 0 : index
    %84 = vector.load %arg16[%c0_40, %c0_41] : memref<1x64xf32, #tpu.memory_space<vmem>>, vector<1x64xf32>
    %85 = vector.broadcast %84 : vector<1x64xf32> to vector<24x64xf32>
    %86 = arith.addf %83, %85 : vector<24x64xf32>
    %cst_42 = arith.constant 0.000000e+00 : f32
    %87 = vector.broadcast %cst_42 : f32 to vector<24x64xf32>
    %88 = arith.maximumf %86, %87 : vector<24x64xf32>
    %89 = arith.truncf %88 : vector<24x64xf32> to vector<24x64xbf16>
    %c0_43 = arith.constant 0 : index
    %c0_44 = arith.constant 0 : index
    %90 = vector.load %arg17[%c0_43, %c0_44] : memref<64x64xbf16, #tpu.memory_space<vmem>>, vector<64x64xbf16>
    %cst_45 = arith.constant dense<0.000000e+00> : vector<24x64xf32>
    %91 = tpu.matmul %89, %90, %cst_45 {dimension_numbers = #tpu.dot_dimension_numbers<[1], [0], [0], [1], [0, 0, 1, 1], [], []>} : vector<24x64xbf16>, vector<64x64xbf16>, vector<24x64xf32> -> vector<24x64xf32>
    %c0_46 = arith.constant 0 : index
    %c0_47 = arith.constant 0 : index
    %92 = vector.load %arg18[%c0_46, %c0_47] : memref<1x64xf32, #tpu.memory_space<vmem>>, vector<1x64xf32>
    %93 = vector.broadcast %92 : vector<1x64xf32> to vector<24x64xf32>
    %94 = arith.addf %91, %93 : vector<24x64xf32>
    %95 = arith.truncf %94 : vector<24x64xf32> to vector<24x64xbf16>
    %cst_48 = arith.constant dense<0.000000e+00> : vector<16x64xf32>
    %96 = tpu.matmul %13, %95, %cst_48 {dimension_numbers = #tpu.dot_dimension_numbers<[1], [0], [0], [1], [0, 0, 1, 1], [], []>} : vector<16x24xbf16>, vector<24x64xbf16>, vector<16x64xf32> -> vector<16x64xf32>
    %97 = tpu.concatenate %74, %96 in 1 : vector<16x32xf32>, vector<16x64xf32> -> vector<16x96xf32>
    %98 = arith.truncf %97 : vector<16x96xf32> to vector<16x96xbf16>
    %c0_49 = arith.constant 0 : index
    %c0_50 = arith.constant 0 : index
    %99 = vector.load %arg19[%c0_49, %c0_50] : memref<96x32xbf16, #tpu.memory_space<vmem>>, vector<96x32xbf16>
    %cst_51 = arith.constant dense<0.000000e+00> : vector<16x32xf32>
    %100 = tpu.matmul %98, %99, %cst_51 {dimension_numbers = #tpu.dot_dimension_numbers<[1], [0], [0], [1], [0, 0, 1, 1], [], []>} : vector<16x96xbf16>, vector<96x32xbf16>, vector<16x32xf32> -> vector<16x32xf32>
    %c0_52 = arith.constant 0 : index
    %c0_53 = arith.constant 0 : index
    %101 = vector.load %arg20[%c0_52, %c0_53] : memref<1x32xf32, #tpu.memory_space<vmem>>, vector<1x32xf32>
    %102 = vector.broadcast %101 : vector<1x32xf32> to vector<16x32xf32>
    %103 = arith.addf %100, %102 : vector<16x32xf32>
    %cst_54 = arith.constant 0.000000e+00 : f32
    %104 = vector.broadcast %cst_54 : f32 to vector<16x32xf32>
    %105 = arith.maximumf %103, %104 : vector<16x32xf32>
    %106 = arith.truncf %105 : vector<16x32xf32> to vector<16x32xbf16>
    %c0_55 = arith.constant 0 : index
    %c0_56 = arith.constant 0 : index
    %107 = vector.load %arg21[%c0_55, %c0_56] : memref<32x32xbf16, #tpu.memory_space<vmem>>, vector<32x32xbf16>
    %cst_57 = arith.constant dense<0.000000e+00> : vector<16x32xf32>
    %108 = tpu.matmul %106, %107, %cst_57 {dimension_numbers = #tpu.dot_dimension_numbers<[1], [0], [0], [1], [0, 0, 1, 1], [], []>} : vector<16x32xbf16>, vector<32x32xbf16>, vector<16x32xf32> -> vector<16x32xf32>
    %c0_58 = arith.constant 0 : index
    %c0_59 = arith.constant 0 : index
    %109 = vector.load %arg22[%c0_58, %c0_59] : memref<1x32xf32, #tpu.memory_space<vmem>>, vector<1x32xf32>
    %110 = vector.broadcast %109 : vector<1x32xf32> to vector<16x32xf32>
    %111 = arith.addf %108, %110 : vector<16x32xf32>
    %112 = arith.truncf %111 : vector<16x32xf32> to vector<16x32xbf16>
    %cst_60 = arith.constant dense<0.000000e+00> : vector<48x32xf32>
    %113 = tpu.matmul %6, %112, %cst_60 {dimension_numbers = #tpu.dot_dimension_numbers<[1], [0], [0], [1], [0, 0, 1, 1], [], []>} : vector<48x16xbf16>, vector<16x32xbf16>, vector<48x32xf32> -> vector<48x32xf32>
    %114 = vector.extract_strided_slice %113 {offsets = [0, 0], sizes = [24, 32], strides = [1, 1]} : vector<48x32xf32> to vector<24x32xf32>
    %115 = vector.extract_strided_slice %113 {offsets = [24, 0], sizes = [24, 32], strides = [1, 1]} : vector<48x32xf32> to vector<24x32xf32>
    %116 = tpu.concatenate %114, %115, %115, %114, %94 in 1 : vector<24x32xf32>, vector<24x32xf32>, vector<24x32xf32>, vector<24x32xf32>, vector<24x64xf32> -> vector<24x192xf32>
    %117 = arith.truncf %116 : vector<24x192xf32> to vector<24x192xbf16>
    %c0_61 = arith.constant 0 : index
    %c0_62 = arith.constant 0 : index
    %118 = vector.load %arg23[%c0_61, %c0_62] : memref<192x64xbf16, #tpu.memory_space<vmem>>, vector<192x64xbf16>
    %cst_63 = arith.constant dense<0.000000e+00> : vector<24x64xf32>
    %119 = tpu.matmul %117, %118, %cst_63 {dimension_numbers = #tpu.dot_dimension_numbers<[1], [0], [0], [1], [0, 0, 1, 1], [], []>} : vector<24x192xbf16>, vector<192x64xbf16>, vector<24x64xf32> -> vector<24x64xf32>
    %c0_64 = arith.constant 0 : index
    %c0_65 = arith.constant 0 : index
    %120 = vector.load %arg24[%c0_64, %c0_65] : memref<1x64xf32, #tpu.memory_space<vmem>>, vector<1x64xf32>
    %121 = vector.broadcast %120 : vector<1x64xf32> to vector<24x64xf32>
    %122 = arith.addf %119, %121 : vector<24x64xf32>
    %cst_66 = arith.constant 0.000000e+00 : f32
    %123 = vector.broadcast %cst_66 : f32 to vector<24x64xf32>
    %124 = arith.maximumf %122, %123 : vector<24x64xf32>
    %125 = arith.truncf %124 : vector<24x64xf32> to vector<24x64xbf16>
    %c0_67 = arith.constant 0 : index
    %c0_68 = arith.constant 0 : index
    %126 = vector.load %arg25[%c0_67, %c0_68] : memref<64x64xbf16, #tpu.memory_space<vmem>>, vector<64x64xbf16>
    %cst_69 = arith.constant dense<0.000000e+00> : vector<24x64xf32>
    %127 = tpu.matmul %125, %126, %cst_69 {dimension_numbers = #tpu.dot_dimension_numbers<[1], [0], [0], [1], [0, 0, 1, 1], [], []>} : vector<24x64xbf16>, vector<64x64xbf16>, vector<24x64xf32> -> vector<24x64xf32>
    %c0_70 = arith.constant 0 : index
    %c0_71 = arith.constant 0 : index
    %128 = vector.load %arg26[%c0_70, %c0_71] : memref<1x64xf32, #tpu.memory_space<vmem>>, vector<1x64xf32>
    %129 = vector.broadcast %128 : vector<1x64xf32> to vector<24x64xf32>
    %130 = arith.addf %127, %129 : vector<24x64xf32>
    %131 = arith.truncf %130 : vector<24x64xf32> to vector<24x64xbf16>
    %cst_72 = arith.constant dense<0.000000e+00> : vector<16x64xf32>
    %132 = tpu.matmul %13, %131, %cst_72 {dimension_numbers = #tpu.dot_dimension_numbers<[1], [0], [0], [1], [0, 0, 1, 1], [], []>} : vector<16x24xbf16>, vector<24x64xbf16>, vector<16x64xf32> -> vector<16x64xf32>
    %133 = tpu.concatenate %111, %132 in 1 : vector<16x32xf32>, vector<16x64xf32> -> vector<16x96xf32>
    %134 = arith.truncf %133 : vector<16x96xf32> to vector<16x96xbf16>
    %c0_73 = arith.constant 0 : index
    %c0_74 = arith.constant 0 : index
    %135 = vector.load %arg27[%c0_73, %c0_74] : memref<96x32xbf16, #tpu.memory_space<vmem>>, vector<96x32xbf16>
    %cst_75 = arith.constant dense<0.000000e+00> : vector<16x32xf32>
    %136 = tpu.matmul %134, %135, %cst_75 {dimension_numbers = #tpu.dot_dimension_numbers<[1], [0], [0], [1], [0, 0, 1, 1], [], []>} : vector<16x96xbf16>, vector<96x32xbf16>, vector<16x32xf32> -> vector<16x32xf32>
    %c0_76 = arith.constant 0 : index
    %c0_77 = arith.constant 0 : index
    %137 = vector.load %arg28[%c0_76, %c0_77] : memref<1x32xf32, #tpu.memory_space<vmem>>, vector<1x32xf32>
    %138 = vector.broadcast %137 : vector<1x32xf32> to vector<16x32xf32>
    %139 = arith.addf %136, %138 : vector<16x32xf32>
    %cst_78 = arith.constant 0.000000e+00 : f32
    %140 = vector.broadcast %cst_78 : f32 to vector<16x32xf32>
    %141 = arith.maximumf %139, %140 : vector<16x32xf32>
    %142 = arith.truncf %141 : vector<16x32xf32> to vector<16x32xbf16>
    %c0_79 = arith.constant 0 : index
    %c0_80 = arith.constant 0 : index
    %143 = vector.load %arg29[%c0_79, %c0_80] : memref<32x32xbf16, #tpu.memory_space<vmem>>, vector<32x32xbf16>
    %cst_81 = arith.constant dense<0.000000e+00> : vector<16x32xf32>
    %144 = tpu.matmul %142, %143, %cst_81 {dimension_numbers = #tpu.dot_dimension_numbers<[1], [0], [0], [1], [0, 0, 1, 1], [], []>} : vector<16x32xbf16>, vector<32x32xbf16>, vector<16x32xf32> -> vector<16x32xf32>
    %c0_82 = arith.constant 0 : index
    %c0_83 = arith.constant 0 : index
    %145 = vector.load %arg30[%c0_82, %c0_83] : memref<1x32xf32, #tpu.memory_space<vmem>>, vector<1x32xf32>
    %146 = vector.broadcast %145 : vector<1x32xf32> to vector<16x32xf32>
    %147 = arith.addf %144, %146 : vector<16x32xf32>
    %148 = arith.truncf %147 : vector<16x32xf32> to vector<16x32xbf16>
    %c0_84 = arith.constant 0 : index
    %c0_85 = arith.constant 0 : index
    %149 = vector.load %arg31[%c0_84, %c0_85] : memref<32x32xbf16, #tpu.memory_space<vmem>>, vector<32x32xbf16>
    %cst_86 = arith.constant dense<0.000000e+00> : vector<16x32xf32>
    %150 = tpu.matmul %148, %149, %cst_86 {dimension_numbers = #tpu.dot_dimension_numbers<[1], [0], [0], [1], [0, 0, 1, 1], [], []>} : vector<16x32xbf16>, vector<32x32xbf16>, vector<16x32xf32> -> vector<16x32xf32>
    %c0_87 = arith.constant 0 : index
    %c0_88 = arith.constant 0 : index
    %151 = vector.load %arg32[%c0_87, %c0_88] : memref<1x32xf32, #tpu.memory_space<vmem>>, vector<1x32xf32>
    %152 = vector.broadcast %151 : vector<1x32xf32> to vector<16x32xf32>
    %153 = arith.addf %150, %152 : vector<16x32xf32>
    %154 = arith.negf %153 : vector<16x32xf32>
    %155 = math.exp %154 : vector<16x32xf32>
    %cst_89 = arith.constant 1.000000e+00 : f32
    %156 = vector.broadcast %cst_89 : f32 to vector<16x32xf32>
    %157 = arith.addf %156, %155 : vector<16x32xf32>
    %158 = arith.divf %156, %157 : vector<16x32xf32>
    %159 = arith.mulf %153, %158 : vector<16x32xf32>
    %160 = arith.truncf %159 : vector<16x32xf32> to vector<16x32xbf16>
    %c0_90 = arith.constant 0 : index
    %c0_91 = arith.constant 0 : index
    %161 = vector.load %arg33[%c0_90, %c0_91] : memref<32x3xbf16, #tpu.memory_space<vmem>>, vector<32x3xbf16>
    %cst_92 = arith.constant dense<0.000000e+00> : vector<16x3xf32>
    %162 = tpu.matmul %160, %161, %cst_92 {dimension_numbers = #tpu.dot_dimension_numbers<[1], [0], [0], [1], [0, 0, 1, 1], [], []>} : vector<16x32xbf16>, vector<32x3xbf16>, vector<16x3xf32> -> vector<16x3xf32>
    %c0_93 = arith.constant 0 : index
    %c0_94 = arith.constant 0 : index
    %163 = vector.load %arg34[%c0_93, %c0_94] : memref<1x3xf32, #tpu.memory_space<vmem>>, vector<1x3xf32>
    %164 = vector.broadcast %163 : vector<1x3xf32> to vector<16x3xf32>
    %165 = arith.addf %162, %164 : vector<16x3xf32>
    %166 = arith.truncf %130 : vector<24x64xf32> to vector<24x64xbf16>
    %c0_95 = arith.constant 0 : index
    %c0_96 = arith.constant 0 : index
    %167 = vector.load %arg35[%c0_95, %c0_96] : memref<64x32xbf16, #tpu.memory_space<vmem>>, vector<64x32xbf16>
    %cst_97 = arith.constant dense<0.000000e+00> : vector<24x32xf32>
    %168 = tpu.matmul %166, %167, %cst_97 {dimension_numbers = #tpu.dot_dimension_numbers<[1], [0], [0], [1], [0, 0, 1, 1], [], []>} : vector<24x64xbf16>, vector<64x32xbf16>, vector<24x32xf32> -> vector<24x32xf32>
    %c0_98 = arith.constant 0 : index
    %c0_99 = arith.constant 0 : index
    %169 = vector.load %arg36[%c0_98, %c0_99] : memref<1x32xf32, #tpu.memory_space<vmem>>, vector<1x32xf32>
    %170 = vector.broadcast %169 : vector<1x32xf32> to vector<24x32xf32>
    %171 = arith.addf %168, %170 : vector<24x32xf32>
    %172 = arith.negf %171 : vector<24x32xf32>
    %173 = math.exp %172 : vector<24x32xf32>
    %cst_100 = arith.constant 1.000000e+00 : f32
    %174 = vector.broadcast %cst_100 : f32 to vector<24x32xf32>
    %175 = arith.addf %174, %173 : vector<24x32xf32>
    %176 = arith.divf %174, %175 : vector<24x32xf32>
    %177 = arith.mulf %171, %176 : vector<24x32xf32>
    %178 = arith.truncf %177 : vector<24x32xf32> to vector<24x32xbf16>
    %c0_101 = arith.constant 0 : index
    %c0_102 = arith.constant 0 : index
    %179 = vector.load %arg37[%c0_101, %c0_102] : memref<32x2xbf16, #tpu.memory_space<vmem>>, vector<32x2xbf16>
    %cst_103 = arith.constant dense<0.000000e+00> : vector<24x2xf32>
    %180 = tpu.matmul %178, %179, %cst_103 {dimension_numbers = #tpu.dot_dimension_numbers<[1], [0], [0], [1], [0, 0, 1, 1], [], []>} : vector<24x32xbf16>, vector<32x2xbf16>, vector<24x2xf32> -> vector<24x2xf32>
    %c0_104 = arith.constant 0 : index
    %c0_105 = arith.constant 0 : index
    %181 = vector.load %arg38[%c0_104, %c0_105] : memref<1x2xf32, #tpu.memory_space<vmem>>, vector<1x2xf32>
    %182 = vector.broadcast %181 : vector<1x2xf32> to vector<24x2xf32>
    %183 = arith.addf %180, %182 : vector<24x2xf32>
    %184 = arith.truncf %165 : vector<16x3xf32> to vector<16x3xbf16>
    %cst_106 = arith.constant dense<0.000000e+00> : vector<2x3xf32>
    %185 = tpu.matmul %20, %184, %cst_106 {dimension_numbers = #tpu.dot_dimension_numbers<[1], [0], [0], [1], [0, 0, 1, 1], [], []>} : vector<2x16xbf16>, vector<16x3xbf16>, vector<2x3xf32> -> vector<2x3xf32>
    %186 = arith.truncf %185 : vector<2x3xf32> to vector<2x3xbf16>
    %c0_107 = arith.constant 0 : index
    %c0_108 = arith.constant 0 : index
    %187 = vector.load %arg39[%c0_107, %c0_108] : memref<3x32xbf16, #tpu.memory_space<vmem>>, vector<3x32xbf16>
    %cst_109 = arith.constant dense<0.000000e+00> : vector<2x32xf32>
    %188 = tpu.matmul %186, %187, %cst_109 {dimension_numbers = #tpu.dot_dimension_numbers<[1], [0], [0], [1], [0, 0, 1, 1], [], []>} : vector<2x3xbf16>, vector<3x32xbf16>, vector<2x32xf32> -> vector<2x32xf32>
    %c0_110 = arith.constant 0 : index
    %c0_111 = arith.constant 0 : index
    %189 = vector.load %arg40[%c0_110, %c0_111] : memref<1x32xf32, #tpu.memory_space<vmem>>, vector<1x32xf32>
    %190 = vector.broadcast %189 : vector<1x32xf32> to vector<2x32xf32>
    %191 = arith.addf %188, %190 : vector<2x32xf32>
    %192 = arith.negf %191 : vector<2x32xf32>
    %193 = math.exp %192 : vector<2x32xf32>
    %cst_112 = arith.constant 1.000000e+00 : f32
    %194 = vector.broadcast %cst_112 : f32 to vector<2x32xf32>
    %195 = arith.addf %194, %193 : vector<2x32xf32>
    %196 = arith.divf %194, %195 : vector<2x32xf32>
    %197 = arith.mulf %191, %196 : vector<2x32xf32>
    %198 = arith.truncf %197 : vector<2x32xf32> to vector<2x32xbf16>
    %c0_113 = arith.constant 0 : index
    %c0_114 = arith.constant 0 : index
    %199 = vector.load %arg41[%c0_113, %c0_114] : memref<32x1xbf16, #tpu.memory_space<vmem>>, vector<32x1xbf16>
    %cst_115 = arith.constant dense<0.000000e+00> : vector<2x1xf32>
    %200 = tpu.matmul %198, %199, %cst_115 {dimension_numbers = #tpu.dot_dimension_numbers<[1], [0], [0], [1], [0, 0, 1, 1], [], []>} : vector<2x32xbf16>, vector<32x1xbf16>, vector<2x1xf32> -> vector<2x1xf32>
    %c0_116 = arith.constant 0 : index
    %c0_117 = arith.constant 0 : index
    %201 = vector.load %arg42[%c0_116, %c0_117] : memref<1x1xf32, #tpu.memory_space<vmem>>, vector<1x1xf32>
    %202 = vector.broadcast %201 : vector<1x1xf32> to vector<2x1xf32>
    %203 = arith.addf %200, %202 : vector<2x1xf32>
    %c0_118 = arith.constant 0 : index
    %c0_119 = arith.constant 0 : index
    %204 = vector.load %arg43[%c0_118, %c0_119] : memref<16x3xf32, #tpu.memory_space<vmem>>, vector<16x3xf32>
    tpu.vector_store %arg43[%c0_118, %c0_119], %165 {strides = array<i32>} : memref<16x3xf32, #tpu.memory_space<vmem>>, vector<16x3xf32>,
    %c0_120 = arith.constant 0 : index
    %c0_121 = arith.constant 0 : index
    %205 = vector.load %arg44[%c0_120, %c0_121] : memref<24x2xf32, #tpu.memory_space<vmem>>, vector<24x2xf32>
    tpu.vector_store %arg44[%c0_120, %c0_121], %183 {strides = array<i32>} : memref<24x2xf32, #tpu.memory_space<vmem>>, vector<24x2xf32>,
    %c0_122 = arith.constant 0 : index
    %c0_123 = arith.constant 0 : index
    %206 = vector.load %arg45[%c0_122, %c0_123] : memref<2x1xf32, #tpu.memory_space<vmem>>, vector<2x1xf32>
    tpu.vector_store %arg45[%c0_122, %c0_123], %203 {strides = array<i32>} : memref<2x1xf32, #tpu.memory_space<vmem>>, vector<2x1xf32>,
    return
  }
}

</mosaic_0001>

<llo_original>
// kernel: qgnn_forward.1
$region0: #{qgnn_forward.1}
  #allocation0 [shape = 'u32[]', space=smem, size = 0x4, offset = 0x4, fixed_abs, tag = 'smem constant byte address 0x4 - core index']
  #allocation1 [shape = 'u32[144,128]{1,0:T(1,128)}', space=vmem, size = 0x12000, scoped, tag = 'internal scratch']
  #allocation2 [shape = 'f32[1,1]{1,0:T(1,128)S(1)}', space=vmem, size = 0x200, scoped, tag = 'scoped memory for qgnn_forward.1']
  %s0 = inlined_call_operand.smem [shape: u32[46], index: -1, kind: input, shape index: {}]
  %s1 = sld [smem:[%s0]]
  %s2 = scalar_lea.smem %s0, 1
  %s3 = sld [smem:[%s2]]
  %s4 = scalar_lea.smem %s0, 2
  %s5 = sld [smem:[%s4]]
  %s6 = scalar_lea.smem %s0, 3
  %s7 = sld [smem:[%s6]]
  %s8 = scalar_lea.smem %s0, 4
  %s9 = sld [smem:[%s8]]
  %s10 = scalar_lea.smem %s0, 5
  %s11 = sld [smem:[%s10]]
  %s12 = scalar_lea.smem %s0, 6
  %s13 = sld [smem:[%s12]]
  %s14 = scalar_lea.smem %s0, 7
  %s15 = sld [smem:[%s14]]
  %s16 = scalar_lea.smem %s0, 8
  %s17 = sld [smem:[%s16]]
  %s18 = scalar_lea.smem %s0, 9
  %s19 = sld [smem:[%s18]]
  %s20 = scalar_lea.smem %s0, 10
  %s21 = sld [smem:[%s20]]
  %s22 = scalar_lea.smem %s0, 11
  %s23 = sld [smem:[%s22]]
  %s24 = scalar_lea.smem %s0, 12
  %s25 = sld [smem:[%s24]]
  %s26 = scalar_lea.smem %s0, 13
  %s27 = sld [smem:[%s26]]
  %s28 = scalar_lea.smem %s0, 14
  %s29 = sld [smem:[%s28]]
  %s30 = scalar_lea.smem %s0, 15
  %s31 = sld [smem:[%s30]]
  %s32 = scalar_lea.smem %s0, 16
  %s33 = sld [smem:[%s32]]
  %s34 = scalar_lea.smem %s0, 17
  %s35 = sld [smem:[%s34]]
  %s36 = scalar_lea.smem %s0, 18
  %s37 = sld [smem:[%s36]]
  %s38 = scalar_lea.smem %s0, 19
  %s39 = sld [smem:[%s38]]
  %s40 = scalar_lea.smem %s0, 20
  %s41 = sld [smem:[%s40]]
  %s42 = scalar_lea.smem %s0, 21
  %s43 = sld [smem:[%s42]]
  %s44 = scalar_lea.smem %s0, 22
  %s45 = sld [smem:[%s44]]
  %s46 = scalar_lea.smem %s0, 23
  %s47 = sld [smem:[%s46]]
  %s48 = scalar_lea.smem %s0, 24
  %s49 = sld [smem:[%s48]]
  %s50 = scalar_lea.smem %s0, 25
  %s51 = sld [smem:[%s50]]
  %s52 = scalar_lea.smem %s0, 26
  %s53 = sld [smem:[%s52]]
  %s54 = scalar_lea.smem %s0, 27
  %s55 = sld [smem:[%s54]]
  %s56 = scalar_lea.smem %s0, 28
  %s57 = sld [smem:[%s56]]
  %s58 = scalar_lea.smem %s0, 29
  %s59 = sld [smem:[%s58]]
  %s60 = scalar_lea.smem %s0, 30
  %s61 = sld [smem:[%s60]]
  %s62 = scalar_lea.smem %s0, 31
  %s63 = sld [smem:[%s62]]
  %s64 = scalar_lea.smem %s0, 32
  %s65 = sld [smem:[%s64]]
  %s66 = scalar_lea.smem %s0, 33
  %s67 = sld [smem:[%s66]]
  %s68 = scalar_lea.smem %s0, 34
  %s69 = sld [smem:[%s68]]
  %s70 = scalar_lea.smem %s0, 35
  %s71 = sld [smem:[%s70]]
  %s72 = scalar_lea.smem %s0, 36
  %s73 = sld [smem:[%s72]]
  %s74 = scalar_lea.smem %s0, 37
  %s75 = sld [smem:[%s74]]
  %s76 = scalar_lea.smem %s0, 38
  %s77 = sld [smem:[%s76]]
  %s78 = scalar_lea.smem %s0, 39
  %s79 = sld [smem:[%s78]]
  %s80 = scalar_lea.smem %s0, 40
  %s81 = sld [smem:[%s80]]
  %s82 = scalar_lea.smem %s0, 41
  %s83 = sld [smem:[%s82]]
  %s84 = scalar_lea.smem %s0, 42
  %s85 = sld [smem:[%s84]]
  %s86 = scalar_lea.smem %s0, 43
  %s87 = sld [smem:[%s86]]
  %s88 = scalar_lea.smem %s0, 44
  %s89 = sld [smem:[%s88]]
  %s90 = scalar_lea.smem %s0, 45
  %s91 = sld [smem:[%s90]]
  %92 = xla_tuple %s87, %s89, %s91
  %s93 = sld [smem:[#allocation0]]
  $region198: #{qgnn_forward.1} parent=0
    _
  %s95 = ssub.s32 1, %s93
  %s96 = scalar_select 0, %s95, %s93
  %v97 = vstv %s85
  %98 = vst [vmem:[#allocation2] sm:$0x1] %v97
  // Predicated region
  $region2: #{qgnn_forward.1} parent=0 // pred_check
    _
  $region3: #{qgnn_forward.1} parent=0 // pred_check_branch
    %100 = sbr.rel (0) target = $region5
  $region4: #{qgnn_forward.1} parent=0 // pred_region
    _
  $region5: #{qgnn_forward.1} parent=0 // pred_fallthru
    _
  // Predicated region
  $region6: #{qgnn_forward.1} parent=0 // pred_check
    _
  $region7: #{qgnn_forward.1} parent=0 // pred_check_branch
    %102 = sbr.rel (0) target = $region9
  $region8: #{qgnn_forward.1} parent=0 // pred_region
    _
  $region9: #{qgnn_forward.1} parent=0 // pred_fallthru
    _
  // Predicated region
  $region10: #{qgnn_forward.1} parent=0 // pred_check
    _
  $region11: #{qgnn_forward.1} parent=0 // pred_check_branch
    %104 = sbr.rel (0) target = $region13
  $region12: #{qgnn_forward.1} parent=0 // pred_region
    _
  $region13: #{qgnn_forward.1} parent=0 // pred_fallthru
    _
  // Predicated region
  $region14: #{qgnn_forward.1} parent=0 // pred_check
    _
  $region15: #{qgnn_forward.1} parent=0 // pred_check_branch
    %106 = sbr.rel (0) target = $region17
  $region16: #{qgnn_forward.1} parent=0 // pred_region
    _
  $region17: #{qgnn_forward.1} parent=0 // pred_fallthru
    _
  // Predicated region
  $region18: #{qgnn_forward.1} parent=0 // pred_check
    _
  $region19: #{qgnn_forward.1} parent=0 // pred_check_branch
    %108 = sbr.rel (0) target = $region21
  $region20: #{qgnn_forward.1} parent=0 // pred_region
    _
  $region21: #{qgnn_forward.1} parent=0 // pred_fallthru
    _
  // Predicated region
  $region22: #{qgnn_forward.1} parent=0 // pred_check
    _
  $region23: #{qgnn_forward.1} parent=0 // pred_check_branch
    %110 = sbr.rel (0) target = $region25
  $region24: #{qgnn_forward.1} parent=0 // pred_region
    _
  $region25: #{qgnn_forward.1} parent=0 // pred_fallthru
    _
  // Predicated region
  $region26: #{qgnn_forward.1} parent=0 // pred_check
    _
  $region27: #{qgnn_forward.1} parent=0 // pred_check_branch
    %112 = sbr.rel (0) target = $region29
  $region28: #{qgnn_forward.1} parent=0 // pred_region
    _
  $region29: #{qgnn_forward.1} parent=0 // pred_fallthru
    _
  // Predicated region
  $region30: #{qgnn_forward.1} parent=0 // pred_check
    _
  $region31: #{qgnn_forward.1} parent=0 // pred_check_branch
    %114 = sbr.rel (0) target = $region33
  $region32: #{qgnn_forward.1} parent=0 // pred_region
    _
  $region33: #{qgnn_forward.1} parent=0 // pred_fallthru
    _
  // Predicated region
  $region34: #{qgnn_forward.1} parent=0 // pred_check
    _
  $region35: #{qgnn_forward.1} parent=0 // pred_check_branch
    %116 = sbr.rel (0) target = $region37
  $region36: #{qgnn_forward.1} parent=0 // pred_region
    _
  $region37: #{qgnn_forward.1} parent=0 // pred_fallthru
    _
  // Predicated region
  $region38: #{qgnn_forward.1} parent=0 // pred_check
    _
  $region39: #{qgnn_forward.1} parent=0 // pred_check_branch
    %118 = sbr.rel (0) target = $region41
  $region40: #{qgnn_forward.1} parent=0 // pred_region
    _
  $region41: #{qgnn_forward.1} parent=0 // pred_fallthru
    _
  // Predicated region
  $region42: #{qgnn_forward.1} parent=0 // pred_check
    _
  $region43: #{qgnn_forward.1} parent=0 // pred_check_branch
    %120 = sbr.rel (0) target = $region45
  $region44: #{qgnn_forward.1} parent=0 // pred_region
    _
  $region45: #{qgnn_forward.1} parent=0 // pred_fallthru
    _
  // Predicated region
  $region46: #{qgnn_forward.1} parent=0 // pred_check
    _
  $region47: #{qgnn_forward.1} parent=0 // pred_check_branch
    %122 = sbr.rel (0) target = $region49
  $region48: #{qgnn_forward.1} parent=0 // pred_region
    _
  $region49: #{qgnn_forward.1} parent=0 // pred_fallthru
    _
  // Predicated region
  $region50: #{qgnn_forward.1} parent=0 // pred_check
    _
  $region51: #{qgnn_forward.1} parent=0 // pred_check_branch
    %124 = sbr.rel (0) target = $region53
  $region52: #{qgnn_forward.1} parent=0 // pred_region
    _
  $region53: #{qgnn_forward.1} parent=0 // pred_fallthru
    _
  // Predicated region
  $region54: #{qgnn_forward.1} parent=0 // pred_check
    _
  $region55: #{qgnn_forward.1} parent=0 // pred_check_branch
    %126 = sbr.rel (0) target = $region57
  $region56: #{qgnn_forward.1} parent=0 // pred_region
    _
  $region57: #{qgnn_forward.1} parent=0 // pred_fallthru
    _
  // Predicated region
  $region58: #{qgnn_forward.1} parent=0 // pred_check
    _
  $region59: #{qgnn_forward.1} parent=0 // pred_check_branch
    %128 = sbr.rel (0) target = $region61
  $region60: #{qgnn_forward.1} parent=0 // pred_region
    _
  $region61: #{qgnn_forward.1} parent=0 // pred_fallthru
    _
  // Predicated region
  $region62: #{qgnn_forward.1} parent=0 // pred_check
    _
  $region63: #{qgnn_forward.1} parent=0 // pred_check_branch
    %130 = sbr.rel (0) target = $region65
  $region64: #{qgnn_forward.1} parent=0 // pred_region
    _
  $region65: #{qgnn_forward.1} parent=0 // pred_fallthru
    _
  // Predicated region
  $region66: #{qgnn_forward.1} parent=0 // pred_check
    _
  $region67: #{qgnn_forward.1} parent=0 // pred_check_branch
    %132 = sbr.rel (0) target = $region69
  $region68: #{qgnn_forward.1} parent=0 // pred_region
    _
  $region69: #{qgnn_forward.1} parent=0 // pred_fallthru
    _
  // Predicated region
  $region70: #{qgnn_forward.1} parent=0 // pred_check
    _
  $region71: #{qgnn_forward.1} parent=0 // pred_check_branch
    %134 = sbr.rel (0) target = $region73
  $region72: #{qgnn_forward.1} parent=0 // pred_region
    _
  $region73: #{qgnn_forward.1} parent=0 // pred_fallthru
    _
  // Predicated region
  $region74: #{qgnn_forward.1} parent=0 // pred_check
    _
  $region75: #{qgnn_forward.1} parent=0 // pred_check_branch
    %136 = sbr.rel (0) target = $region77
  $region76: #{qgnn_forward.1} parent=0 // pred_region
    _
  $region77: #{qgnn_forward.1} parent=0 // pred_fallthru
    _
  // Predicated region
  $region78: #{qgnn_forward.1} parent=0 // pred_check
    _
  $region79: #{qgnn_forward.1} parent=0 // pred_check_branch
    %138 = sbr.rel (0) target = $region81
  $region80: #{qgnn_forward.1} parent=0 // pred_region
    _
  $region81: #{qgnn_forward.1} parent=0 // pred_fallthru
    _
  // Predicated region
  $region82: #{qgnn_forward.1} parent=0 // pred_check
    _
  $region83: #{qgnn_forward.1} parent=0 // pred_check_branch
    %140 = sbr.rel (0) target = $region85
  $region84: #{qgnn_forward.1} parent=0 // pred_region
    _
  $region85: #{qgnn_forward.1} parent=0 // pred_fallthru
    _
  // Predicated region
  $region86: #{qgnn_forward.1} parent=0 // pred_check
    _
  $region87: #{qgnn_forward.1} parent=0 // pred_check_branch
    %142 = sbr.rel (0) target = $region89
  $region88: #{qgnn_forward.1} parent=0 // pred_region
    _
  $region89: #{qgnn_forward.1} parent=0 // pred_fallthru
    _
  // Predicated region
  $region90: #{qgnn_forward.1} parent=0 // pred_check
    _
  $region91: #{qgnn_forward.1} parent=0 // pred_check_branch
    %144 = sbr.rel (0) target = $region93
  $region92: #{qgnn_forward.1} parent=0 // pred_region
    _
  $region93: #{qgnn_forward.1} parent=0 // pred_fallthru
    _
  // Predicated region
  $region94: #{qgnn_forward.1} parent=0 // pred_check
    _
  $region95: #{qgnn_forward.1} parent=0 // pred_check_branch
    %146 = sbr.rel (0) target = $region97
  $region96: #{qgnn_forward.1} parent=0 // pred_region
    _
  $region97: #{qgnn_forward.1} parent=0 // pred_fallthru
    _
  // Predicated region
  $region98: #{qgnn_forward.1} parent=0 // pred_check
    _
  $region99: #{qgnn_forward.1} parent=0 // pred_check_branch
    %148 = sbr.rel (0) target = $region101
  $region100: #{qgnn_forward.1} parent=0 // pred_region
    _
  $region101: #{qgnn_forward.1} parent=0 // pred_fallthru
    _
  // Predicated region
  $region102: #{qgnn_forward.1} parent=0 // pred_check
    _
  $region103: #{qgnn_forward.1} parent=0 // pred_check_branch
    %150 = sbr.rel (0) target = $region105
  $region104: #{qgnn_forward.1} parent=0 // pred_region
    _
  $region105: #{qgnn_forward.1} parent=0 // pred_fallthru
    _
  // Predicated region
  $region106: #{qgnn_forward.1} parent=0 // pred_check
    _
  $region107: #{qgnn_forward.1} parent=0 // pred_check_branch
    %152 = sbr.rel (0) target = $region109
  $region108: #{qgnn_forward.1} parent=0 // pred_region
    _
  $region109: #{qgnn_forward.1} parent=0 // pred_fallthru
    _
  // Predicated region
  $region110: #{qgnn_forward.1} parent=0 // pred_check
    _
  $region111: #{qgnn_forward.1} parent=0 // pred_check_branch
    %154 = sbr.rel (0) target = $region113
  $region112: #{qgnn_forward.1} parent=0 // pred_region
    _
  $region113: #{qgnn_forward.1} parent=0 // pred_fallthru
    _
  // Predicated region
  $region114: #{qgnn_forward.1} parent=0 // pred_check
    _
  $region115: #{qgnn_forward.1} parent=0 // pred_check_branch
    %156 = sbr.rel (0) target = $region117
  $region116: #{qgnn_forward.1} parent=0 // pred_region
    _
  $region117: #{qgnn_forward.1} parent=0 // pred_fallthru
    _
  // Predicated region
  $region118: #{qgnn_forward.1} parent=0 // pred_check
    _
  $region119: #{qgnn_forward.1} parent=0 // pred_check_branch
    %158 = sbr.rel (0) target = $region121
  $region120: #{qgnn_forward.1} parent=0 // pred_region
    _
  $region121: #{qgnn_forward.1} parent=0 // pred_fallthru
    _
  // Predicated region
  $region122: #{qgnn_forward.1} parent=0 // pred_check
    _
  $region123: #{qgnn_forward.1} parent=0 // pred_check_branch
    %160 = sbr.rel (0) target = $region125
  $region124: #{qgnn_forward.1} parent=0 // pred_region
    _
  $region125: #{qgnn_forward.1} parent=0 // pred_fallthru
    _
  // Predicated region
  $region126: #{qgnn_forward.1} parent=0 // pred_check
    _
  $region127: #{qgnn_forward.1} parent=0 // pred_check_branch
    %162 = sbr.rel (0) target = $region129
  $region128: #{qgnn_forward.1} parent=0 // pred_region
    _
  $region129: #{qgnn_forward.1} parent=0 // pred_fallthru
    _
  // Predicated region
  $region130: #{qgnn_forward.1} parent=0 // pred_check
    _
  $region131: #{qgnn_forward.1} parent=0 // pred_check_branch
    %164 = sbr.rel (0) target = $region133
  $region132: #{qgnn_forward.1} parent=0 // pred_region
    _
  $region133: #{qgnn_forward.1} parent=0 // pred_fallthru
    _
  // Predicated region
  $region134: #{qgnn_forward.1} parent=0 // pred_check
    _
  $region135: #{qgnn_forward.1} parent=0 // pred_check_branch
    %166 = sbr.rel (0) target = $region137
  $region136: #{qgnn_forward.1} parent=0 // pred_region
    _
  $region137: #{qgnn_forward.1} parent=0 // pred_fallthru
    _
  // Predicated region
  $region138: #{qgnn_forward.1} parent=0 // pred_check
    _
  $region139: #{qgnn_forward.1} parent=0 // pred_check_branch
    %168 = sbr.rel (0) target = $region141
  $region140: #{qgnn_forward.1} parent=0 // pred_region
    _
  $region141: #{qgnn_forward.1} parent=0 // pred_fallthru
    _
  // Predicated region
  $region142: #{qgnn_forward.1} parent=0 // pred_check
    _
  $region143: #{qgnn_forward.1} parent=0 // pred_check_branch
    %170 = sbr.rel (0) target = $region145
  $region144: #{qgnn_forward.1} parent=0 // pred_region
    _
  $region145: #{qgnn_forward.1} parent=0 // pred_fallthru
    _
  // Predicated region
  $region146: #{qgnn_forward.1} parent=0 // pred_check
    _
  $region147: #{qgnn_forward.1} parent=0 // pred_check_branch
    %172 = sbr.rel (0) target = $region149
  $region148: #{qgnn_forward.1} parent=0 // pred_region
    _
  $region149: #{qgnn_forward.1} parent=0 // pred_fallthru
    _
  // Predicated region
  $region150: #{qgnn_forward.1} parent=0 // pred_check
    _
  $region151: #{qgnn_forward.1} parent=0 // pred_check_branch
    %174 = sbr.rel (0) target = $region153
  $region152: #{qgnn_forward.1} parent=0 // pred_region
    _
  $region153: #{qgnn_forward.1} parent=0 // pred_fallthru
    _
  // Predicated region
  $region154: #{qgnn_forward.1} parent=0 // pred_check
    _
  $region155: #{qgnn_forward.1} parent=0 // pred_check_branch
    %176 = sbr.rel (0) target = $region157
  $region156: #{qgnn_forward.1} parent=0 // pred_region
    _
  $region157: #{qgnn_forward.1} parent=0 // pred_fallthru
    _
  // Predicated region
  $region158: #{qgnn_forward.1} parent=0 // pred_check
    _
  $region159: #{qgnn_forward.1} parent=0 // pred_check_branch
    %178 = sbr.rel (0) target = $region161
  $region160: #{qgnn_forward.1} parent=0 // pred_region
    _
  $region161: #{qgnn_forward.1} parent=0 // pred_fallthru
    _
  // Predicated region
  $region162: #{qgnn_forward.1} parent=0 // pred_check
    _
  $region163: #{qgnn_forward.1} parent=0 // pred_check_branch
    %180 = sbr.rel (0) target = $region165
  $region164: #{qgnn_forward.1} parent=0 // pred_region
    _
  $region165: #{qgnn_forward.1} parent=0 // pred_fallthru
    _
  // Predicated region
  $region166: #{qgnn_forward.1} parent=0 // pred_check
    _
  $region167: #{qgnn_forward.1} parent=0 // pred_check_branch
    %182 = sbr.rel (0) target = $region169
  $region168: #{qgnn_forward.1} parent=0 // pred_region
    _
  $region169: #{qgnn_forward.1} parent=0 // pred_fallthru
    _
  // Predicated region
  $region170: #{qgnn_forward.1} parent=0 // pred_check
    _
  $region171: #{qgnn_forward.1} parent=0 // pred_check_branch
    %184 = sbr.rel (0) target = $region173
  $region172: #{qgnn_forward.1} parent=0 // pred_region
    _
  $region173: #{qgnn_forward.1} parent=0 // pred_fallthru
    _
  %v186 = vlaneseq
  %v187 = vand.u32 %v186, 127
  %v188 = vld [vmem:[%s1] sm:$0xff]
  %v189 = vld [vmem:[%s1 + $0x8] sm:$0xff]
  %v190 = vld [vmem:[%s1 + $0x10] sm:$0xff]
  %v191 = vld [vmem:[%s1 + $0x18] sm:$0xff]
  %v192 = vld [vmem:[%s1 + $0x20] sm:$0xff]
  %v193 = vld [vmem:[%s1 + $0x28] sm:$0xff]
  %194 = vset.pattern.permute.xlu0 0
  %195 = vperm.xlu0 %194, %v188
  %v196 = vpop.permute.xlu0 %195
  %197 = vset.pattern.permute.xlu0 0
  %198 = vperm.xlu0 %197, %v189
  %v199 = vpop.permute.xlu0 %198
  %200 = vset.pattern.permute.xlu0 0
  %201 = vperm.xlu0 %200, %v190
  %v202 = vpop.permute.xlu0 %201
  %203 = vset.pattern.permute.xlu0 0
  %204 = vperm.xlu0 %203, %v191
  %v205 = vpop.permute.xlu0 %204
  %206 = vset.pattern.permute.xlu0 0
  %207 = vperm.xlu0 %206, %v192
  %v208 = vpop.permute.xlu0 %207
  %209 = vset.pattern.permute.xlu0 0
  %210 = vperm.xlu0 %209, %v193
  %v211 = vpop.permute.xlu0 %210
  %vm212 = vcmp.eq.s32.totalorder %v196, %v187
  %vm213 = vcmp.eq.s32.totalorder %v199, %v187
  %vm214 = vcmp.eq.s32.totalorder %v202, %v187
  %vm215 = vcmp.eq.s32.totalorder %v205, %v187
  %vm216 = vcmp.eq.s32.totalorder %v208, %v187
  %vm217 = vcmp.eq.s32.totalorder %v211, %v187
  %v218 = vsel %vm212, 1, 0
  %v219 = vsel %vm213, 1, 0
  %v220 = vsel %vm214, 1, 0
  %v221 = vsel %vm215, 1, 0
  %v222 = vsel %vm216, 1, 0
  %v223 = vsel %vm217, 1, 0
  %v224 = vcvt.s32.f32 %v218
  %v225 = vcvt.s32.f32 %v219
  %v226 = vcvt.s32.f32 %v220
  %v227 = vcvt.s32.f32 %v221
  %v228 = vcvt.s32.f32 %v222
  %v229 = vcvt.s32.f32 %v223
  %v230 = vpack.c.bf16 %v225, %v224
  %v231 = vpack.c.bf16 %v227, %v226
  %v232 = vpack.c.bf16 %v229, %v228
  %v233 = vlaneseq
  %v234 = vshrl.u32 %v233, 7
  %v235 = vadd.s32 %v234, 8
  %v236 = vld [vmem:[%s3] sm:$0x1]
  %v237 = vlaneseq
  %v238 = vshrl.u32 %v237, 7
  %v239 = vsub.s32 0, %v238
  %v240 = vrot.slane %v236, %v239
  %vm241 = vcmp.eq.s32.totalorder %v240, %v234
  %vm242 = vcmp.eq.s32.totalorder %v240, %v235
  %v243 = vsel %vm241, 1, 0
  %v244 = vsel %vm242, 1, 0
  %v245 = vcvt.s32.f32 %v243
  %v246 = vcvt.s32.f32 %v244
  %v247 = vpack.c.bf16 %v246, %v245
  %v248 = vld [vmem:[%s5] sm:$0x1]
  %v249 = vlaneseq
  %v250 = vshrl.u32 %v249, 7
  %v251 = vsub.s32 0, %v250
  %v252 = vrot.slane %v248, %v251
  %vm253 = vcmp.eq.s32.totalorder %v252, %v234
  %v254 = vsel %vm253, 1, 0
  %v255 = vcvt.s32.f32 %v254
  %v256 = vpack.c.bf16 %v255, %v255
  %v257 = vld [vmem:[%s7] sm:$0xff]
  %v258 = vld [vmem:[%s7 + $0x8] sm:$0xff]
  %259 = vset.pattern.permute.xlu0 0
  %260 = vperm.xlu0 %259, %v257
  %v261 = vpop.permute.xlu0 %260
  %262 = vset.pattern.permute.xlu0 0
  %263 = vperm.xlu0 %262, %v258
  %v264 = vpop.permute.xlu0 %263
  %vm265 = vcmp.eq.s32.totalorder %v261, %v187
  %vm266 = vcmp.eq.s32.totalorder %v264, %v187
  %v267 = vsel %vm265, 1, 0
  %v268 = vsel %vm266, 1, 0
  %v269 = vcvt.s32.f32 %v267
  %v270 = vcvt.s32.f32 %v268
  %v271 = vld [vmem:[%s9] sm:$0x1]
  %v273 = vlaneseq
  %v274 = vshrl.u32 %v273, 7
  %v275 = vsub.s32 0, %v274
  %v276 = vrot.slane %v271, %v275
  %v278 = vmul.f32 %v269, %v276
  %v279 = vmul.f32 %v270, %v276
  %vm280 = vcmask 15360
  %v281 = vsel %vm280, %v278, 0.0
  %282 = vadd.xlane.f32.xlu0 %v281
  %v283 = vpop.xlane.xlu0 %282
  %v284 = vsel %vm280, %v279, 0.0
  %285 = vadd.xlane.f32.xlu0 %v284
  %v286 = vpop.xlane.xlu0 %285
  %v287 = vpack.c.bf16 %v286, %v283
  %vm288 = vcmask 130048
  %v290 = vsel %vm288, %v230, 0
  %v293 = vsel %vm288, %v231, 0
  %v296 = vsel %vm288, %v232, 0
  %298 = vmatprep.subr.bf16.mxu0 0
  %299 = vmatpush1.bf16.msra.mxu0 0
  %300 = vmatprep.subr.bf16.mxu0 0
  %301 = vmatpush1.bf16.msra.mxu0 0
  %302 = vmatprep.subr.bf16.mxu0 0
  %303 = vmatpush1.bf16.msra.mxu0 0
  %304 = vmatprep.subr.bf16.mxu0 0
  %305 = vmatpush1.bf16.msra.mxu0 0
  %306 = vmatprep.subr.bf16.mxu0 0
  %307 = vmatpush1.bf16.msra.mxu0 0
  %308 = vmatprep.subr.bf16.mxu0 0
  %309 = vmatpush1.bf16.msra.mxu0 0
  %310 = vmatprep.subr.bf16.mxu0 0
  %311 = vmatpush1.bf16.msra.mxu0 0
  %312 = vmatprep.subr.bf16.mxu0 0
  %313 = vmatpush1.bf16.msra.mxu0 %v287
  %314 = vmatprep.subr.bf16.mxu0 0
  %315 = vmatpush2.bf16.msra.mxu0 0
  %316 = vmatprep.subr.bf16.mxu0 0
  %317 = vmatpush2.bf16.msra.mxu0 0
  %318 = vmatprep.subr.bf16.mxu0 0
  %319 = vmatpush2.bf16.msra.mxu0 0
  %320 = vmatprep.subr.bf16.mxu0 0
  %321 = vmatpush2.bf16.msra.mxu0 0
  %322 = vmatprep.subr.bf16.mxu0 0
  %323 = vmatpush2.bf16.msra.mxu0 0
  %324 = vmatprep.subr.bf16.mxu0 0
  %325 = vmatpush2.bf16.msra.mxu0 0
  %326 = vmatprep.subr.bf16.mxu0 0
  %327 = vmatpush2.bf16.msra.mxu0 0
  %328 = vmatprep.subr.bf16.mxu0 0
  %329 = vmatpush2.bf16.msra.mxu0 0
  %330 = vmatprep.mubr.bf16.mxu0 0
  %331 = vmatmul.mubr.bf16.gmra.mxu0 %v290
  %v332 = vpop.f32.mrf.mxu0
  %v333 = vadd.f32 0.0, %v332
  %v334 = vpop.f32.mrf.mxu0
  %v335 = vpop.f32.mrf.mxu0
  %v336 = vadd.f32 0.0, %v335
  %v337 = vpop.f32.mrf.mxu0
  %338 = vmatprep.mubr.bf16.mxu0 0
  %339 = vmatmul.mubr.bf16.gmra.mxu0 %v293
  %v340 = vpop.f32.mrf.mxu0
  %v341 = vadd.f32 0.0, %v340
  %v342 = vpop.f32.mrf.mxu0
  %v343 = vpop.f32.mrf.mxu0
  %v344 = vpop.f32.mrf.mxu0
  %345 = vmatprep.mubr.bf16.mxu0 0
  %346 = vmatmul.mubr.bf16.gmra.mxu0 %v296
  %v347 = vpop.f32.mrf.mxu0
  %v348 = vpop.f32.mrf.mxu0
  %v349 = vpop.f32.mrf.mxu0
  %v350 = vpop.f32.mrf.mxu0
  %351 = vdwg.mxu0
  %v352 = vld [vmem:[%s11] sm:$0xff]
  %v353 = vld [vmem:[%s11 + $0x8] sm:$0xff]
  %vm354 = vcmask 31744
  %v355 = vsel %vm354, %v352, %v283
  %v356 = vsel %vm354, %v353, %v286
  %v357 = vpack.c.bf16 %v356, %v355
  %v358 = vld [vmem:[%s13] sm:$0xff]
  %v359 = vld [vmem:[%s13 + $0x8] sm:$0xff]
  %v360 = vld [vmem:[%s13 + $0x10] sm:$0xff]
  %364 = vrot.lane.b32.xlu0 %v333, 5
  %v365 = vpop.permute.xlu0 %364
  %366 = vrot.lane.b32.xlu0 %v336, 5
  %v367 = vpop.permute.xlu0 %366
  %368 = vrot.lane.b32.xlu0 %v341, 5
  %v369 = vpop.permute.xlu0 %368
  %vm373 = vcmask 39936
  %v374 = vsel %vm373, %v358, %v365
  %v375 = vsel %vm373, %v359, %v367
  %v376 = vsel %vm373, %v360, %v369
  %v377 = vpack.c.bf16 %v375, %v374
  %v378 = vpack.c.bf16 %v376, %v376
  %v379 = vld [vmem:[%s23] sm:$0x7]
  %v380 = vld [vmem:[%s25] sm:$0x1]
  %v382 = vlaneseq
  %v383 = vshrl.u32 %v382, 7
  %v384 = vsub.s32 0, %v383
  %v385 = vrot.slane %v380, %v384
  %vm387 = vcmask 48128
  %v389 = vsel %vm387, %v377, 0
  %v392 = vsel %vm387, %v378, 0
  %vm394 = vcmask 1042432
  %v396 = vsel %vm394, %v379, 0
  %398 = vmatprep.subr.bf16.mxu0 0
  %399 = vmatpush1.bf16.msra.mxu0 0
  %400 = vmatprep.subr.bf16.mxu0 0
  %401 = vmatpush1.bf16.msra.mxu0 0
  %402 = vmatprep.subr.bf16.mxu0 0
  %403 = vmatpush1.bf16.msra.mxu0 0
  %404 = vmatprep.subr.bf16.mxu0 0
  %405 = vmatpush1.bf16.msra.mxu0 0
  %406 = vmatprep.subr.bf16.mxu0 0
  %407 = vmatpush1.bf16.msra.mxu0 0
  %408 = vmatprep.subr.bf16.mxu0 0
  %409 = vmatpush1.bf16.msra.mxu0 0
  %410 = vmatprep.subr.bf16.mxu0 0
  %411 = vmatpush1.bf16.msra.mxu0 0
  %412 = vmatprep.subr.bf16.mxu0 0
  %413 = vmatpush1.bf16.msra.mxu0 %v396
  %414 = vmatprep.subr.bf16.mxu0 0
  %415 = vmatpush2.bf16.msra.mxu0 0
  %416 = vmatprep.subr.bf16.mxu0 0
  %417 = vmatpush2.bf16.msra.mxu0 0
  %418 = vmatprep.subr.bf16.mxu0 0
  %419 = vmatpush2.bf16.msra.mxu0 0
  %420 = vmatprep.subr.bf16.mxu0 0
  %421 = vmatpush2.bf16.msra.mxu0 0
  %422 = vmatprep.subr.bf16.mxu0 0
  %423 = vmatpush2.bf16.msra.mxu0 0
  %424 = vmatprep.subr.bf16.mxu0 0
  %425 = vmatpush2.bf16.msra.mxu0 0
  %426 = vmatprep.subr.bf16.mxu0 0
  %427 = vmatpush2.bf16.msra.mxu0 0
  %428 = vmatprep.subr.bf16.mxu0 0
  %429 = vmatpush2.bf16.msra.mxu0 0
  %430 = vmatprep.mubr.bf16.mxu0 0
  %431 = vmatmul.mubr.bf16.gmra.mxu0 %v389
  %v432 = vpop.f32.mrf.mxu0
  %v433 = vadd.f32 %v385, %v432
  %v434 = vpop.f32.mrf.mxu0
  %v435 = vpop.f32.mrf.mxu0
  %v436 = vadd.f32 %v385, %v435
  %v437 = vpop.f32.mrf.mxu0
  %438 = vmatprep.mubr.bf16.mxu0 0
  %439 = vmatmul.mubr.bf16.gmra.mxu0 %v392
  %v440 = vpop.f32.mrf.mxu0
  %v441 = vadd.f32 %v385, %v440
  %v442 = vpop.f32.mrf.mxu0
  %v443 = vpop.f32.mrf.mxu0
  %v444 = vpop.f32.mrf.mxu0
  %445 = vdwg.mxu0
  %v446 = vxor.u32 %v433, 2147483648
  %v447 = vxor.u32 %v436, 2147483648
  %v448 = vxor.u32 %v441, 2147483648
  %v449 = vmul.f32 %v446, 1.442695
  %v450 = vpow.pop %v449
  %v451 = vmul.f32 %v447, 1.442695
  %v452 = vpow.pop %v451
  %v453 = vmul.f32 %v448, 1.442695
  %v454 = vpow.pop %v453
  %v455 = vadd.f32 %v450, 1.0
  %v456 = vadd.f32 %v452, 1.0
  %v457 = vadd.f32 %v454, 1.0
  %v458 = vrcp.pop %v455
  %v459 = vmul.f32 1.0, %v458
  %v460 = vrcp.pop %v456
  %v461 = vmul.f32 1.0, %v460
  %v462 = vrcp.pop %v457
  %v463 = vmul.f32 1.0, %v462
  %v464 = vmul.f32 %v433, %v459
  %v465 = vmul.f32 %v436, %v461
  %v466 = vmul.f32 %v441, %v463
  %v467 = vpack.c.bf16 %v465, %v464
  %v468 = vpack.c.bf16 %v466, %v466
  %v469 = vld [vmem:[%s27] sm:$0xf]
  %v470 = vld [vmem:[%s27 + $0x4] sm:$0xf]
  %v471 = vld [vmem:[%s27 + $0x8] sm:$0xf]
  %v472 = vld [vmem:[%s27 + $0xc] sm:$0xf]
  %v473 = vld [vmem:[%s29] sm:$0x1]
  %v475 = vlaneseq
  %v476 = vshrl.u32 %v475, 7
  %v477 = vsub.s32 0, %v476
  %v478 = vrot.slane %v473, %v477
  %v484 = vunpack.c.l.b16 %v469
  %v485 = vunpack.c.l.b16 %v470
  %v486 = vunpack.c.l.b16 %v471
  %v487 = vunpack.c.l.b16 %v472
  %v488 = vpack.c.b16 %v485, %v484
  %v489 = vpack.c.b16 %v487, %v486
  %vm492 = vcmask 261120
  %v494 = vsel %vm492, %v467, 0
  %v497 = vsel %vm492, %v468, 0
  %499 = vmatprep.subr.bf16.mxu0 0
  %500 = vmatpush1.bf16.msra.mxu0 0
  %501 = vmatprep.subr.bf16.mxu0 0
  %502 = vmatpush1.bf16.msra.mxu0 0
  %503 = vmatprep.subr.bf16.mxu0 0
  %504 = vmatpush1.bf16.msra.mxu0 0
  %505 = vmatprep.subr.bf16.mxu0 0
  %506 = vmatpush1.bf16.msra.mxu0 0
  %507 = vmatprep.subr.bf16.mxu0 0
  %508 = vmatpush1.bf16.msra.mxu0 0
  %509 = vmatprep.subr.bf16.mxu0 0
  %510 = vmatpush1.bf16.msra.mxu0 0
  %511 = vmatprep.subr.bf16.mxu0 0
  %512 = vmatpush1.bf16.msra.mxu0 %v489
  %513 = vmatprep.subr.bf16.mxu0 0
  %514 = vmatpush1.bf16.msra.mxu0 %v488
  %515 = vmatprep.subr.bf16.mxu0 0
  %516 = vmatpush2.bf16.msra.mxu0 0
  %517 = vmatprep.subr.bf16.mxu0 0
  %518 = vmatpush2.bf16.msra.mxu0 0
  %519 = vmatprep.subr.bf16.mxu0 0
  %520 = vmatpush2.bf16.msra.mxu0 0
  %521 = vmatprep.subr.bf16.mxu0 0
  %522 = vmatpush2.bf16.msra.mxu0 0
  %523 = vmatprep.subr.bf16.mxu0 0
  %524 = vmatpush2.bf16.msra.mxu0 0
  %525 = vmatprep.subr.bf16.mxu0 0
  %526 = vmatpush2.bf16.msra.mxu0 0
  %527 = vmatprep.subr.bf16.mxu0 0
  %528 = vmatpush2.bf16.msra.mxu0 0
  %529 = vmatprep.subr.bf16.mxu0 0
  %530 = vmatpush2.bf16.msra.mxu0 0
  %531 = vmatprep.mubr.bf16.mxu0 0
  %532 = vmatmul.mubr.bf16.gmra.mxu0 %v494
  %v533 = vpop.f32.mrf.mxu0
  %v534 = vadd.f32 %v478, %v533
  %v535 = vpop.f32.mrf.mxu0
  %v536 = vpop.f32.mrf.mxu0
  %v537 = vadd.f32 %v478, %v536
  %v538 = vpop.f32.mrf.mxu0
  %539 = vmatprep.mubr.bf16.mxu0 0
  %540 = vmatmul.mubr.bf16.gmra.mxu0 %v497
  %v541 = vpop.f32.mrf.mxu0
  %v542 = vadd.f32 %v478, %v541
  %v543 = vpop.f32.mrf.mxu0
  %v544 = vpop.f32.mrf.mxu0
  %v545 = vpop.f32.mrf.mxu0
  %546 = vdwg.mxu0
  %v547 = vld [vmem:[%s15] sm:$0x7]
  %v548 = vld [vmem:[%s17] sm:$0x1]
  %v550 = vlaneseq
  %v551 = vshrl.u32 %v550, 7
  %v552 = vsub.s32 0, %v551
  %v553 = vrot.slane %v548, %v552
  %v556 = vsel %vm373, %v357, 0
  %vm558 = vcmask 1041408
  %v559 = vsel %vm558, 4294967295, 65535
  %v560 = vsel %vm394, %v559, 0
  %v562 = vand.u32 %v547, %v560
  %564 = vmatprep.subr.bf16.mxu0 0
  %565 = vmatpush1.bf16.msra.mxu0 0
  %566 = vmatprep.subr.bf16.mxu0 0
  %567 = vmatpush1.bf16.msra.mxu0 0
  %568 = vmatprep.subr.bf16.mxu0 0
  %569 = vmatpush1.bf16.msra.mxu0 0
  %570 = vmatprep.subr.bf16.mxu0 0
  %571 = vmatpush1.bf16.msra.mxu0 0
  %572 = vmatprep.subr.bf16.mxu0 0
  %573 = vmatpush1.bf16.msra.mxu0 0
  %574 = vmatprep.subr.bf16.mxu0 0
  %575 = vmatpush1.bf16.msra.mxu0 0
  %576 = vmatprep.subr.bf16.mxu0 0
  %577 = vmatpush1.bf16.msra.mxu0 0
  %578 = vmatprep.subr.bf16.mxu0 0
  %579 = vmatpush1.bf16.msra.mxu0 %v562
  %580 = vmatprep.subr.bf16.mxu0 0
  %581 = vmatpush2.bf16.msra.mxu0 0
  %582 = vmatprep.subr.bf16.mxu0 0
  %583 = vmatpush2.bf16.msra.mxu0 0
  %584 = vmatprep.subr.bf16.mxu0 0
  %585 = vmatpush2.bf16.msra.mxu0 0
  %586 = vmatprep.subr.bf16.mxu0 0
  %587 = vmatpush2.bf16.msra.mxu0 0
  %588 = vmatprep.subr.bf16.mxu0 0
  %589 = vmatpush2.bf16.msra.mxu0 0
  %590 = vmatprep.subr.bf16.mxu0 0
  %591 = vmatpush2.bf16.msra.mxu0 0
  %592 = vmatprep.subr.bf16.mxu0 0
  %593 = vmatpush2.bf16.msra.mxu0 0
  %594 = vmatprep.subr.bf16.mxu0 0
  %595 = vmatpush2.bf16.msra.mxu0 0
  %596 = vmatprep.mubr.bf16.mxu0 0
  %597 = vmatmul.mubr.bf16.gmra.mxu0 %v556
  %v598 = vpop.f32.mrf.mxu0
  %v599 = vadd.f32 %v553, %v598
  %v600 = vpop.f32.mrf.mxu0
  %v601 = vpop.f32.mrf.mxu0
  %v602 = vadd.f32 %v553, %v601
  %v603 = vpop.f32.mrf.mxu0
  %604 = vdwg.mxu0
  %v605 = vxor.u32 %v599, 2147483648
  %v606 = vxor.u32 %v602, 2147483648
  %v607 = vmul.f32 %v605, 1.442695
  %v608 = vpow.pop %v607
  %v609 = vmul.f32 %v606, 1.442695
  %v610 = vpow.pop %v609
  %v611 = vadd.f32 %v608, 1.0
  %v612 = vadd.f32 %v610, 1.0
  %v613 = vrcp.pop %v611
  %v614 = vmul.f32 1.0, %v613
  %v615 = vrcp.pop %v612
  %v616 = vmul.f32 1.0, %v615
  %v617 = vmul.f32 %v599, %v614
  %v618 = vmul.f32 %v602, %v616
  %v619 = vpack.c.bf16 %v618, %v617
  %v620 = vld [vmem:[%s19] sm:$0xf]
  %v621 = vld [vmem:[%s19 + $0x4] sm:$0xf]
  %v622 = vld [vmem:[%s19 + $0x8] sm:$0xf]
  %v623 = vld [vmem:[%s19 + $0xc] sm:$0xf]
  %v624 = vld [vmem:[%s21] sm:$0x1]
  %v626 = vlaneseq
  %v627 = vshrl.u32 %v626, 7
  %v628 = vsub.s32 0, %v627
  %v629 = vrot.slane %v624, %v628
  %v635 = vunpack.c.l.b16 %v620
  %v636 = vunpack.c.l.b16 %v621
  %v637 = vunpack.c.l.b16 %v622
  %v638 = vunpack.c.l.b16 %v623
  %v639 = vpack.c.b16 %v636, %v635
  %v640 = vpack.c.b16 %v638, %v637
  %v644 = vsel %vm492, %v619, 0
  %646 = vmatprep.subr.bf16.mxu0 0
  %647 = vmatpush1.bf16.msra.mxu0 0
  %648 = vmatprep.subr.bf16.mxu0 0
  %649 = vmatpush1.bf16.msra.mxu0 0
  %650 = vmatprep.subr.bf16.mxu0 0
  %651 = vmatpush1.bf16.msra.mxu0 0
  %652 = vmatprep.subr.bf16.mxu0 0
  %653 = vmatpush1.bf16.msra.mxu0 0
  %654 = vmatprep.subr.bf16.mxu0 0
  %655 = vmatpush1.bf16.msra.mxu0 0
  %656 = vmatprep.subr.bf16.mxu0 0
  %657 = vmatpush1.bf16.msra.mxu0 0
  %658 = vmatprep.subr.bf16.mxu0 0
  %659 = vmatpush1.bf16.msra.mxu0 %v640
  %660 = vmatprep.subr.bf16.mxu0 0
  %661 = vmatpush1.bf16.msra.mxu0 %v639
  %662 = vmatprep.subr.bf16.mxu0 0
  %663 = vmatpush2.bf16.msra.mxu0 0
  %664 = vmatprep.subr.bf16.mxu0 0
  %665 = vmatpush2.bf16.msra.mxu0 0
  %666 = vmatprep.subr.bf16.mxu0 0
  %667 = vmatpush2.bf16.msra.mxu0 0
  %668 = vmatprep.subr.bf16.mxu0 0
  %669 = vmatpush2.bf16.msra.mxu0 0
  %670 = vmatprep.subr.bf16.mxu0 0
  %671 = vmatpush2.bf16.msra.mxu0 0
  %672 = vmatprep.subr.bf16.mxu0 0
  %673 = vmatpush2.bf16.msra.mxu0 0
  %674 = vmatprep.subr.bf16.mxu0 0
  %675 = vmatpush2.bf16.msra.mxu0 0
  %676 = vmatprep.subr.bf16.mxu0 0
  %677 = vmatpush2.bf16.msra.mxu0 0
  %678 = vmatprep.mubr.bf16.mxu0 0
  %679 = vmatmul.mubr.bf16.gmra.mxu0 %v644
  %v680 = vpop.f32.mrf.mxu0
  %v681 = vadd.f32 %v629, %v680
  %v682 = vpop.f32.mrf.mxu0
  %v683 = vpop.f32.mrf.mxu0
  %v684 = vadd.f32 %v629, %v683
  %v685 = vpop.f32.mrf.mxu0
  %686 = vdwg.mxu0
  %690 = vrot.lane.b32.xlu0 %v534, 32
  %v691 = vpop.permute.xlu0 %690
  %692 = vrot.lane.b32.xlu0 %v537, 32
  %v693 = vpop.permute.xlu0 %692
  %694 = vrot.lane.b32.xlu0 %v542, 32
  %v695 = vpop.permute.xlu0 %694
  %v699 = vsel %vm492, %v534, %v691
  %v700 = vsel %vm492, %v537, %v693
  %v701 = vsel %vm492, %v542, %v695
  %v702 = vpack.c.bf16 %v684, %v681
  %703 = vmatprep.subr.bf16.mxu0 0
  %704 = vmatpush1.bf16.msra.mxu0 0
  %705 = vmatprep.subr.bf16.mxu0 0
  %706 = vmatpush1.bf16.msra.mxu0 0
  %707 = vmatprep.subr.bf16.mxu0 0
  %708 = vmatpush1.bf16.msra.mxu0 0
  %709 = vmatprep.subr.bf16.mxu0 0
  %710 = vmatpush1.bf16.msra.mxu0 0
  %711 = vmatprep.subr.bf16.mxu0 0
  %712 = vmatpush1.bf16.msra.mxu0 0
  %713 = vmatprep.subr.bf16.mxu0 0
  %714 = vmatpush1.bf16.msra.mxu0 0
  %715 = vmatprep.subr.bf16.mxu0 0
  %716 = vmatpush1.bf16.msra.mxu0 0
  %717 = vmatprep.subr.bf16.mxu0 0
  %718 = vmatpush1.bf16.msra.mxu0 %v702
  %719 = vmatprep.subr.bf16.mxu0 0
  %720 = vmatpush2.bf16.msra.mxu0 0
  %721 = vmatprep.subr.bf16.mxu0 0
  %722 = vmatpush2.bf16.msra.mxu0 0
  %723 = vmatprep.subr.bf16.mxu0 0
  %724 = vmatpush2.bf16.msra.mxu0 0
  %725 = vmatprep.subr.bf16.mxu0 0
  %726 = vmatpush2.bf16.msra.mxu0 0
  %727 = vmatprep.subr.bf16.mxu0 0
  %728 = vmatpush2.bf16.msra.mxu0 0
  %729 = vmatprep.subr.bf16.mxu0 0
  %730 = vmatpush2.bf16.msra.mxu0 0
  %731 = vmatprep.subr.bf16.mxu0 0
  %732 = vmatpush2.bf16.msra.mxu0 0
  %733 = vmatprep.subr.bf16.mxu0 0
  %734 = vmatpush2.bf16.msra.mxu0 0
  %735 = vmatprep.mubr.bf16.mxu0 0
  %736 = vmatmul.mubr.bf16.gmra.mxu0 %v290
  %v737 = vpop.f32.mrf.mxu0
  %v738 = vadd.f32 0.0, %v737
  %v739 = vpop.f32.mrf.mxu0
  %v740 = vpop.f32.mrf.mxu0
  %v741 = vadd.f32 0.0, %v740
  %v742 = vpop.f32.mrf.mxu0
  %743 = vmatprep.mubr.bf16.mxu0 0
  %744 = vmatmul.mubr.bf16.gmra.mxu0 %v293
  %v745 = vpop.f32.mrf.mxu0
  %v746 = vadd.f32 0.0, %v745
  %v747 = vpop.f32.mrf.mxu0
  %v748 = vpop.f32.mrf.mxu0
  %v749 = vadd.f32 0.0, %v748
  %v750 = vpop.f32.mrf.mxu0
  %751 = vmatprep.mubr.bf16.mxu0 0
  %752 = vmatmul.mubr.bf16.gmra.mxu0 %v296
  %v753 = vpop.f32.mrf.mxu0
  %v754 = vadd.f32 0.0, %v753
  %v755 = vpop.f32.mrf.mxu0
  %v756 = vpop.f32.mrf.mxu0
  %v757 = vadd.f32 0.0, %v756
  %v758 = vpop.f32.mrf.mxu0
  %759 = vdwg.mxu0
  %763 = vrot.lane.b32.xlu0 %v749, 32
  %v764 = vpop.permute.xlu0 %763
  %765 = vrot.lane.b32.xlu0 %v754, 32
  %v766 = vpop.permute.xlu0 %765
  %767 = vrot.lane.b32.xlu0 %v757, 32
  %v768 = vpop.permute.xlu0 %767
  %772 = vrot.lane.b32.xlu0 %v749, 64
  %v773 = vpop.permute.xlu0 %772
  %774 = vrot.lane.b32.xlu0 %v754, 64
  %v775 = vpop.permute.xlu0 %774
  %776 = vrot.lane.b32.xlu0 %v757, 64
  %v777 = vpop.permute.xlu0 %776
  %784 = vrot.lane.b32.xlu0 %v738, 96
  %v785 = vpop.permute.xlu0 %784
  %786 = vrot.lane.b32.xlu0 %v741, 96
  %v787 = vpop.permute.xlu0 %786
  %788 = vrot.lane.b32.xlu0 %v746, 96
  %v789 = vpop.permute.xlu0 %788
  %v793 = vsel %vm492, %v738, %v764
  %v794 = vsel %vm492, %v741, %v766
  %v795 = vsel %vm492, %v746, %v768
  %vm796 = vcmask 523264
  %v797 = vsel %vm796, %v793, %v773
  %v798 = vsel %vm796, %v794, %v775
  %v799 = vsel %vm796, %v795, %v777
  %vm800 = vcmask 785408
  %v801 = vsel %vm800, %v797, %v785
  %v802 = vsel %vm800, %v798, %v787
  %v803 = vsel %vm800, %v799, %v789
  %v804 = vpack.c.bf16 %v802, %v801
  %v805 = vpack.c.bf16 %v700, %v699
  %v806 = vpack.c.bf16 %v803, %v803
  %v807 = vpack.c.bf16 %v701, %v701
  %v808 = vld [vmem:[%s31] sm:$0xf]
  %v809 = vld [vmem:[%s31 + $0x4] sm:$0xf]
  %v810 = vld [vmem:[%s31 + $0x8] sm:$0xf]
  %v811 = vld [vmem:[%s31 + $0xc] sm:$0xf]
  %v812 = vld [vmem:[%s31 + $0x10] sm:$0xf]
  %v813 = vld [vmem:[%s31 + $0x14] sm:$0xf]
  %v814 = vld [vmem:[%s31 + $0x18] sm:$0xf]
  %v815 = vld [vmem:[%s31 + $0x1c] sm:$0xf]
  %v816 = vld [vmem:[%s31 + $0x20] sm:$0xf]
  %v817 = vld [vmem:[%s31 + $0x24] sm:$0xf]
  %v818 = vld [vmem:[%s31 + $0x28] sm:$0xf]
  %v819 = vld [vmem:[%s31 + $0x2c] sm:$0xf]
  %v820 = vld [vmem:[%s31 + $0x30] sm:$0xf]
  %v821 = vld [vmem:[%s31 + $0x34] sm:$0xf]
  %v822 = vld [vmem:[%s31 + $0x38] sm:$0xf]
  %v823 = vld [vmem:[%s31 + $0x3c] sm:$0xf]
  %v824 = vld [vmem:[%s31 + $0x40] sm:$0xf]
  %v825 = vld [vmem:[%s31 + $0x44] sm:$0xf]
  %v826 = vld [vmem:[%s31 + $0x48] sm:$0xf]
  %v827 = vld [vmem:[%s31 + $0x4c] sm:$0xf]
  %v828 = vld [vmem:[%s31 + $0x50] sm:$0xf]
  %v829 = vld [vmem:[%s31 + $0x54] sm:$0xf]
  %v830 = vld [vmem:[%s31 + $0x58] sm:$0xf]
  %v831 = vld [vmem:[%s31 + $0x5c] sm:$0xf]
  %v832 = vld [vmem:[%s33] sm:$0x1]
  %v834 = vlaneseq
  %v835 = vshrl.u32 %v834, 7
  %v836 = vsub.s32 0, %v835
  %v837 = vrot.slane %v832, %v836
  %v863 = vunpack.c.l.b16 %v808
  %v864 = vunpack.c.l.b16 %v809
  %v865 = vunpack.c.l.b16 %v810
  %v866 = vunpack.c.l.b16 %v811
  %v867 = vunpack.c.l.b16 %v812
  %v868 = vunpack.c.l.b16 %v813
  %v869 = vunpack.c.l.b16 %v814
  %v870 = vunpack.c.l.b16 %v815
  %v871 = vunpack.c.l.b16 %v816
  %v872 = vunpack.c.l.b16 %v817
  %v873 = vunpack.c.l.b16 %v818
  %v874 = vunpack.c.l.b16 %v819
  %v875 = vunpack.c.l.b16 %v820
  %v876 = vunpack.c.l.b16 %v821
  %v877 = vunpack.c.l.b16 %v822
  %v878 = vunpack.c.l.b16 %v823
  %v879 = vunpack.c.l.b16 %v824
  %v880 = vunpack.c.l.b16 %v825
  %v881 = vunpack.c.l.b16 %v826
  %v882 = vunpack.c.l.b16 %v827
  %v883 = vunpack.c.l.b16 %v828
  %v884 = vunpack.c.l.b16 %v829
  %v885 = vunpack.c.l.b16 %v830
  %v886 = vunpack.c.l.b16 %v831
  %v887 = vpack.c.b16 %v864, %v863
  %v888 = vpack.c.b16 %v866, %v865
  %v889 = vpack.c.b16 %v868, %v867
  %v890 = vpack.c.b16 %v870, %v869
  %v891 = vpack.c.b16 %v872, %v871
  %v892 = vpack.c.b16 %v874, %v873
  %v893 = vpack.c.b16 %v876, %v875
  %v894 = vpack.c.b16 %v878, %v877
  %v895 = vpack.c.b16 %v880, %v879
  %v896 = vpack.c.b16 %v882, %v881
  %v897 = vpack.c.b16 %v884, %v883
  %v898 = vpack.c.b16 %v886, %v885
  %v912 = vsel %vm796, %v805, 0
  %v915 = vsel %vm796, %v807, 0
  %917 = vmatprep.subr.bf16.mxu0 0
  %918 = vmatpush1.bf16.msra.mxu0 %v894
  %919 = vmatprep.subr.bf16.mxu0 0
  %920 = vmatpush1.bf16.msra.mxu0 %v893
  %921 = vmatprep.subr.bf16.mxu0 0
  %922 = vmatpush1.bf16.msra.mxu0 %v892
  %923 = vmatprep.subr.bf16.mxu0 0
  %924 = vmatpush1.bf16.msra.mxu0 %v891
  %925 = vmatprep.subr.bf16.mxu0 0
  %926 = vmatpush1.bf16.msra.mxu0 %v890
  %927 = vmatprep.subr.bf16.mxu0 0
  %928 = vmatpush1.bf16.msra.mxu0 %v889
  %929 = vmatprep.subr.bf16.mxu0 0
  %930 = vmatpush1.bf16.msra.mxu0 %v888
  %931 = vmatprep.subr.bf16.mxu0 0
  %932 = vmatpush1.bf16.msra.mxu0 %v887
  %933 = vmatprep.subr.bf16.mxu0 0
  %934 = vmatpush2.bf16.msra.mxu0 0
  %935 = vmatprep.subr.bf16.mxu0 0
  %936 = vmatpush2.bf16.msra.mxu0 0
  %937 = vmatprep.subr.bf16.mxu0 0
  %938 = vmatpush2.bf16.msra.mxu0 0
  %939 = vmatprep.subr.bf16.mxu0 0
  %940 = vmatpush2.bf16.msra.mxu0 0
  %941 = vmatprep.subr.bf16.mxu0 0
  %942 = vmatpush2.bf16.msra.mxu0 %v898
  %943 = vmatprep.subr.bf16.mxu0 0
  %944 = vmatpush2.bf16.msra.mxu0 %v897
  %945 = vmatprep.subr.bf16.mxu0 0
  %946 = vmatpush2.bf16.msra.mxu0 %v896
  %947 = vmatprep.subr.bf16.mxu0 0
  %948 = vmatpush2.bf16.msra.mxu0 %v895
  %949 = vmatprep.mubr.bf16.mxu0 %v912
  %950 = vmatmul.mubr.bf16.gmra.mxu0 %v804
  %v951 = vpop.f32.mrf.mxu0
  %v952 = vadd.f32 %v837, %v951
  %v953 = vpop.f32.mrf.mxu0
  %v954 = vpop.f32.mrf.mxu0
  %v955 = vadd.f32 %v837, %v954
  %v956 = vpop.f32.mrf.mxu0
  %957 = vmatprep.mubr.bf16.mxu0 %v915
  %958 = vmatmul.mubr.bf16.gmra.mxu0 %v806
  %v959 = vpop.f32.mrf.mxu0
  %v960 = vadd.f32 %v837, %v959
  %v961 = vpop.f32.mrf.mxu0
  %v962 = vpop.f32.mrf.mxu0
  %v963 = vpop.f32.mrf.mxu0
  %964 = vdwg.mxu0
  %v965 = vmax.f32 %v952, 0.0
  %v966 = vmax.f32 %v955, 0.0
  %v967 = vmax.f32 %v960, 0.0
  %v968 = vpack.c.bf16 %v966, %v965
  %v969 = vpack.c.bf16 %v967, %v967
  %v970 = vld [vmem:[%s35] sm:$0xf]
  %v971 = vld [vmem:[%s35 + $0x4] sm:$0xf]
  %v972 = vld [vmem:[%s35 + $0x8] sm:$0xf]
  %v973 = vld [vmem:[%s35 + $0xc] sm:$0xf]
  %v974 = vld [vmem:[%s35 + $0x10] sm:$0xf]
  %v975 = vld [vmem:[%s35 + $0x14] sm:$0xf]
  %v976 = vld [vmem:[%s35 + $0x18] sm:$0xf]
  %v977 = vld [vmem:[%s35 + $0x1c] sm:$0xf]
  %v978 = vld [vmem:[%s37] sm:$0x1]
  %v980 = vlaneseq
  %v981 = vshrl.u32 %v980, 7
  %v982 = vsub.s32 0, %v981
  %v983 = vrot.slane %v978, %v982
  %v993 = vunpack.c.l.b16 %v970
  %v994 = vunpack.c.l.b16 %v971
  %v995 = vunpack.c.l.b16 %v972
  %v996 = vunpack.c.l.b16 %v973
  %v997 = vunpack.c.l.b16 %v974
  %v998 = vunpack.c.l.b16 %v975
  %v999 = vunpack.c.l.b16 %v976
  %v1000 = vunpack.c.l.b16 %v977
  %v1001 = vpack.c.b16 %v994, %v993
  %v1002 = vpack.c.b16 %v996, %v995
  %v1003 = vpack.c.b16 %v998, %v997
  %v1004 = vpack.c.b16 %v1000, %v999
  %v1010 = vsel %vm796, %v968, 0
  %v1013 = vsel %vm796, %v969, 0
  %1015 = vmatprep.subr.bf16.mxu0 0
  %1016 = vmatpush1.bf16.msra.mxu0 0
  %1017 = vmatprep.subr.bf16.mxu0 0
  %1018 = vmatpush1.bf16.msra.mxu0 0
  %1019 = vmatprep.subr.bf16.mxu0 0
  %1020 = vmatpush1.bf16.msra.mxu0 0
  %1021 = vmatprep.subr.bf16.mxu0 0
  %1022 = vmatpush1.bf16.msra.mxu0 0
  %1023 = vmatprep.subr.bf16.mxu0 0
  %1024 = vmatpush1.bf16.msra.mxu0 %v1004
  %1025 = vmatprep.subr.bf16.mxu0 0
  %1026 = vmatpush1.bf16.msra.mxu0 %v1003
  %1027 = vmatprep.subr.bf16.mxu0 0
  %1028 = vmatpush1.bf16.msra.mxu0 %v1002
  %1029 = vmatprep.subr.bf16.mxu0 0
  %1030 = vmatpush1.bf16.msra.mxu0 %v1001
  %1031 = vmatprep.subr.bf16.mxu0 0
  %1032 = vmatpush2.bf16.msra.mxu0 0
  %1033 = vmatprep.subr.bf16.mxu0 0
  %1034 = vmatpush2.bf16.msra.mxu0 0
  %1035 = vmatprep.subr.bf16.mxu0 0
  %1036 = vmatpush2.bf16.msra.mxu0 0
  %1037 = vmatprep.subr.bf16.mxu0 0
  %1038 = vmatpush2.bf16.msra.mxu0 0
  %1039 = vmatprep.subr.bf16.mxu0 0
  %1040 = vmatpush2.bf16.msra.mxu0 0
  %1041 = vmatprep.subr.bf16.mxu0 0
  %1042 = vmatpush2.bf16.msra.mxu0 0
  %1043 = vmatprep.subr.bf16.mxu0 0
  %1044 = vmatpush2.bf16.msra.mxu0 0
  %1045 = vmatprep.subr.bf16.mxu0 0
  %1046 = vmatpush2.bf16.msra.mxu0 0
  %1047 = vmatprep.mubr.bf16.mxu0 0
  %1048 = vmatmul.mubr.bf16.gmra.mxu0 %v1010
  %v1049 = vpop.f32.mrf.mxu0
  %v1050 = vadd.f32 %v983, %v1049
  %v1051 = vpop.f32.mrf.mxu0
  %v1052 = vpop.f32.mrf.mxu0
  %v1053 = vadd.f32 %v983, %v1052
  %v1054 = vpop.f32.mrf.mxu0
  %1055 = vmatprep.mubr.bf16.mxu0 0
  %1056 = vmatmul.mubr.bf16.gmra.mxu0 %v1013
  %v1057 = vpop.f32.mrf.mxu0
  %v1058 = vadd.f32 %v983, %v1057
  %v1059 = vpop.f32.mrf.mxu0
  %v1060 = vpop.f32.mrf.mxu0
  %v1061 = vpop.f32.mrf.mxu0
  %1062 = vdwg.mxu0
  %v1063 = vpack.c.bf16 %v1053, %v1050
  %v1064 = vpack.c.bf16 %v1058, %v1058
  %vm1065 = vcmask 195584
  %v1067 = vsel %vm1065, %v247, 0
  %vm1069 = vcmask 1043456
  %v1071 = vsel %vm1069, %v1064, 0
  %1073 = vmatprep.subr.bf16.mxu0 0
  %1074 = vmatpush1.bf16.msra.mxu0 0
  %1075 = vmatprep.subr.bf16.mxu0 0
  %1076 = vmatpush1.bf16.msra.mxu0 0
  %1077 = vmatprep.subr.bf16.mxu0 0
  %1078 = vmatpush1.bf16.msra.mxu0 0
  %1079 = vmatprep.subr.bf16.mxu0 0
  %1080 = vmatpush1.bf16.msra.mxu0 0
  %1081 = vmatprep.subr.bf16.mxu0 0
  %1082 = vmatpush1.bf16.msra.mxu0 0
  %1083 = vmatprep.subr.bf16.mxu0 0
  %1084 = vmatpush1.bf16.msra.mxu0 0
  %1085 = vmatprep.subr.bf16.mxu0 0
  %1086 = vmatpush1.bf16.msra.mxu0 %v1071
  %1087 = vmatprep.subr.bf16.mxu0 0
  %1088 = vmatpush1.bf16.msra.mxu0 %v1063
  %1089 = vmatprep.subr.bf16.mxu0 0
  %1090 = vmatpush2.bf16.msra.mxu0 0
  %1091 = vmatprep.subr.bf16.mxu0 0
  %1092 = vmatpush2.bf16.msra.mxu0 0
  %1093 = vmatprep.subr.bf16.mxu0 0
  %1094 = vmatpush2.bf16.msra.mxu0 0
  %1095 = vmatprep.subr.bf16.mxu0 0
  %1096 = vmatpush2.bf16.msra.mxu0 0
  %1097 = vmatprep.subr.bf16.mxu0 0
  %1098 = vmatpush2.bf16.msra.mxu0 0
  %1099 = vmatprep.subr.bf16.mxu0 0
  %1100 = vmatpush2.bf16.msra.mxu0 0
  %1101 = vmatprep.subr.bf16.mxu0 0
  %1102 = vmatpush2.bf16.msra.mxu0 0
  %1103 = vmatprep.subr.bf16.mxu0 0
  %1104 = vmatpush2.bf16.msra.mxu0 0
  %1105 = vmatprep.mubr.bf16.mxu0 0
  %1106 = vmatmul.mubr.bf16.gmra.mxu0 %v1067
  %v1107 = vpop.f32.mrf.mxu0
  %v1108 = vadd.f32 0.0, %v1107
  %v1109 = vpop.f32.mrf.mxu0
  %v1110 = vpop.f32.mrf.mxu0
  %v1111 = vadd.f32 0.0, %v1110
  %v1112 = vpop.f32.mrf.mxu0
  %1113 = vdwg.mxu0
  %1116 = vrot.lane.b32.xlu0 %v1108, 32
  %v1117 = vpop.permute.xlu0 %1116
  %1118 = vrot.lane.b32.xlu0 %v1111, 32
  %v1119 = vpop.permute.xlu0 %1118
  %v1122 = vsel %vm492, %v681, %v1117
  %v1123 = vsel %vm492, %v684, %v1119
  %v1124 = vpack.c.bf16 %v1123, %v1122
  %v1125 = vld [vmem:[%s39] sm:$0xf]
  %v1126 = vld [vmem:[%s39 + $0x4] sm:$0xf]
  %v1127 = vld [vmem:[%s39 + $0x8] sm:$0xf]
  %v1128 = vld [vmem:[%s39 + $0xc] sm:$0xf]
  %v1129 = vld [vmem:[%s39 + $0x10] sm:$0xf]
  %v1130 = vld [vmem:[%s39 + $0x14] sm:$0xf]
  %v1131 = vld [vmem:[%s39 + $0x18] sm:$0xf]
  %v1132 = vld [vmem:[%s39 + $0x1c] sm:$0xf]
  %v1133 = vld [vmem:[%s39 + $0x20] sm:$0xf]
  %v1134 = vld [vmem:[%s39 + $0x24] sm:$0xf]
  %v1135 = vld [vmem:[%s39 + $0x28] sm:$0xf]
  %v1136 = vld [vmem:[%s39 + $0x2c] sm:$0xf]
  %v1137 = vld [vmem:[%s41] sm:$0x1]
  %v1139 = vlaneseq
  %v1140 = vshrl.u32 %v1139, 7
  %v1141 = vsub.s32 0, %v1140
  %v1142 = vrot.slane %v1137, %v1141
  %v1156 = vunpack.c.l.b16 %v1125
  %v1157 = vunpack.c.l.b16 %v1126
  %v1158 = vunpack.c.l.b16 %v1127
  %v1159 = vunpack.c.l.b16 %v1128
  %v1160 = vunpack.c.l.b16 %v1129
  %v1161 = vunpack.c.l.b16 %v1130
  %v1162 = vunpack.c.l.b16 %v1131
  %v1163 = vunpack.c.l.b16 %v1132
  %v1164 = vunpack.c.l.b16 %v1133
  %v1165 = vunpack.c.l.b16 %v1134
  %v1166 = vunpack.c.l.b16 %v1135
  %v1167 = vunpack.c.l.b16 %v1136
  %v1168 = vpack.c.b16 %v1157, %v1156
  %v1169 = vpack.c.b16 %v1159, %v1158
  %v1170 = vpack.c.b16 %v1161, %v1160
  %v1171 = vpack.c.b16 %v1163, %v1162
  %v1172 = vpack.c.b16 %v1165, %v1164
  %v1173 = vpack.c.b16 %v1167, %v1166
  %v1181 = vsel %vm800, %v1124, 0
  %1183 = vmatprep.subr.bf16.mxu0 0
  %1184 = vmatpush1.bf16.msra.mxu0 0
  %1185 = vmatprep.subr.bf16.mxu0 0
  %1186 = vmatpush1.bf16.msra.mxu0 0
  %1187 = vmatprep.subr.bf16.mxu0 0
  %1188 = vmatpush1.bf16.msra.mxu0 %v1173
  %1189 = vmatprep.subr.bf16.mxu0 0
  %1190 = vmatpush1.bf16.msra.mxu0 %v1172
  %1191 = vmatprep.subr.bf16.mxu0 0
  %1192 = vmatpush1.bf16.msra.mxu0 %v1171
  %1193 = vmatprep.subr.bf16.mxu0 0
  %1194 = vmatpush1.bf16.msra.mxu0 %v1170
  %1195 = vmatprep.subr.bf16.mxu0 0
  %1196 = vmatpush1.bf16.msra.mxu0 %v1169
  %1197 = vmatprep.subr.bf16.mxu0 0
  %1198 = vmatpush1.bf16.msra.mxu0 %v1168
  %1199 = vmatprep.subr.bf16.mxu0 0
  %1200 = vmatpush2.bf16.msra.mxu0 0
  %1201 = vmatprep.subr.bf16.mxu0 0
  %1202 = vmatpush2.bf16.msra.mxu0 0
  %1203 = vmatprep.subr.bf16.mxu0 0
  %1204 = vmatpush2.bf16.msra.mxu0 0
  %1205 = vmatprep.subr.bf16.mxu0 0
  %1206 = vmatpush2.bf16.msra.mxu0 0
  %1207 = vmatprep.subr.bf16.mxu0 0
  %1208 = vmatpush2.bf16.msra.mxu0 0
  %1209 = vmatprep.subr.bf16.mxu0 0
  %1210 = vmatpush2.bf16.msra.mxu0 0
  %1211 = vmatprep.subr.bf16.mxu0 0
  %1212 = vmatpush2.bf16.msra.mxu0 0
  %1213 = vmatprep.subr.bf16.mxu0 0
  %1214 = vmatpush2.bf16.msra.mxu0 0
  %1215 = vmatprep.mubr.bf16.mxu0 0
  %1216 = vmatmul.mubr.bf16.gmra.mxu0 %v1181
  %v1217 = vpop.f32.mrf.mxu0
  %v1218 = vadd.f32 %v1142, %v1217
  %v1219 = vpop.f32.mrf.mxu0
  %v1220 = vpop.f32.mrf.mxu0
  %v1221 = vadd.f32 %v1142, %v1220
  %v1222 = vpop.f32.mrf.mxu0
  %1223 = vdwg.mxu0
  %v1224 = vmax.f32 %v1218, 0.0
  %v1225 = vmax.f32 %v1221, 0.0
  %v1226 = vpack.c.bf16 %v1225, %v1224
  %v1227 = vld [vmem:[%s43] sm:$0xf]
  %v1228 = vld [vmem:[%s43 + $0x4] sm:$0xf]
  %v1229 = vld [vmem:[%s43 + $0x8] sm:$0xf]
  %v1230 = vld [vmem:[%s43 + $0xc] sm:$0xf]
  %v1231 = vld [vmem:[%s45] sm:$0x1]
  %v1233 = vlaneseq
  %v1234 = vshrl.u32 %v1233, 7
  %v1235 = vsub.s32 0, %v1234
  %v1236 = vrot.slane %v1231, %v1235
  %v1242 = vunpack.c.l.b16 %v1227
  %v1243 = vunpack.c.l.b16 %v1228
  %v1244 = vunpack.c.l.b16 %v1229
  %v1245 = vunpack.c.l.b16 %v1230
  %v1246 = vpack.c.b16 %v1243, %v1242
  %v1247 = vpack.c.b16 %v1245, %v1244
  %v1251 = vsel %vm492, %v1226, 0
  %1253 = vmatprep.subr.bf16.mxu0 0
  %1254 = vmatpush1.bf16.msra.mxu0 0
  %1255 = vmatprep.subr.bf16.mxu0 0
  %1256 = vmatpush1.bf16.msra.mxu0 0
  %1257 = vmatprep.subr.bf16.mxu0 0
  %1258 = vmatpush1.bf16.msra.mxu0 0
  %1259 = vmatprep.subr.bf16.mxu0 0
  %1260 = vmatpush1.bf16.msra.mxu0 0
  %1261 = vmatprep.subr.bf16.mxu0 0
  %1262 = vmatpush1.bf16.msra.mxu0 0
  %1263 = vmatprep.subr.bf16.mxu0 0
  %1264 = vmatpush1.bf16.msra.mxu0 0
  %1265 = vmatprep.subr.bf16.mxu0 0
  %1266 = vmatpush1.bf16.msra.mxu0 %v1247
  %1267 = vmatprep.subr.bf16.mxu0 0
  %1268 = vmatpush1.bf16.msra.mxu0 %v1246
  %1269 = vmatprep.subr.bf16.mxu0 0
  %1270 = vmatpush2.bf16.msra.mxu0 0
  %1271 = vmatprep.subr.bf16.mxu0 0
  %1272 = vmatpush2.bf16.msra.mxu0 0
  %1273 = vmatprep.subr.bf16.mxu0 0
  %1274 = vmatpush2.bf16.msra.mxu0 0
  %1275 = vmatprep.subr.bf16.mxu0 0
  %1276 = vmatpush2.bf16.msra.mxu0 0
  %1277 = vmatprep.subr.bf16.mxu0 0
  %1278 = vmatpush2.bf16.msra.mxu0 0
  %1279 = vmatprep.subr.bf16.mxu0 0
  %1280 = vmatpush2.bf16.msra.mxu0 0
  %1281 = vmatprep.subr.bf16.mxu0 0
  %1282 = vmatpush2.bf16.msra.mxu0 0
  %1283 = vmatprep.subr.bf16.mxu0 0
  %1284 = vmatpush2.bf16.msra.mxu0 0
  %1285 = vmatprep.mubr.bf16.mxu0 0
  %1286 = vmatmul.mubr.bf16.gmra.mxu0 %v1251
  %v1287 = vpop.f32.mrf.mxu0
  %v1288 = vadd.f32 %v1236, %v1287
  %v1289 = vpop.f32.mrf.mxu0
  %v1290 = vpop.f32.mrf.mxu0
  %v1291 = vadd.f32 %v1236, %v1290
  %v1292 = vpop.f32.mrf.mxu0
  %1293 = vdwg.mxu0
  %v1294 = vpack.c.bf16 %v1291, %v1288
  %1295 = vmatprep.subr.bf16.mxu0 0
  %1296 = vmatpush1.bf16.msra.mxu0 0
  %1297 = vmatprep.subr.bf16.mxu0 0
  %1298 = vmatpush1.bf16.msra.mxu0 0
  %1299 = vmatprep.subr.bf16.mxu0 0
  %1300 = vmatpush1.bf16.msra.mxu0 0
  %1301 = vmatprep.subr.bf16.mxu0 0
  %1302 = vmatpush1.bf16.msra.mxu0 0
  %1303 = vmatprep.subr.bf16.mxu0 0
  %1304 = vmatpush1.bf16.msra.mxu0 0
  %1305 = vmatprep.subr.bf16.mxu0 0
  %1306 = vmatpush1.bf16.msra.mxu0 0
  %1307 = vmatprep.subr.bf16.mxu0 0
  %1308 = vmatpush1.bf16.msra.mxu0 0
  %1309 = vmatprep.subr.bf16.mxu0 0
  %1310 = vmatpush1.bf16.msra.mxu0 %v1294
  %1311 = vmatprep.subr.bf16.mxu0 0
  %1312 = vmatpush2.bf16.msra.mxu0 0
  %1313 = vmatprep.subr.bf16.mxu0 0
  %1314 = vmatpush2.bf16.msra.mxu0 0
  %1315 = vmatprep.subr.bf16.mxu0 0
  %1316 = vmatpush2.bf16.msra.mxu0 0
  %1317 = vmatprep.subr.bf16.mxu0 0
  %1318 = vmatpush2.bf16.msra.mxu0 0
  %1319 = vmatprep.subr.bf16.mxu0 0
  %1320 = vmatpush2.bf16.msra.mxu0 0
  %1321 = vmatprep.subr.bf16.mxu0 0
  %1322 = vmatpush2.bf16.msra.mxu0 0
  %1323 = vmatprep.subr.bf16.mxu0 0
  %1324 = vmatpush2.bf16.msra.mxu0 0
  %1325 = vmatprep.subr.bf16.mxu0 0
  %1326 = vmatpush2.bf16.msra.mxu0 0
  %1327 = vmatprep.mubr.bf16.mxu0 0
  %1328 = vmatmul.mubr.bf16.gmra.mxu0 %v290
  %v1329 = vpop.f32.mrf.mxu0
  %v1330 = vadd.f32 0.0, %v1329
  %v1331 = vpop.f32.mrf.mxu0
  %v1332 = vpop.f32.mrf.mxu0
  %v1333 = vadd.f32 0.0, %v1332
  %v1334 = vpop.f32.mrf.mxu0
  %1335 = vmatprep.mubr.bf16.mxu0 0
  %1336 = vmatmul.mubr.bf16.gmra.mxu0 %v293
  %v1337 = vpop.f32.mrf.mxu0
  %v1338 = vadd.f32 0.0, %v1337
  %v1339 = vpop.f32.mrf.mxu0
  %v1340 = vpop.f32.mrf.mxu0
  %v1341 = vadd.f32 0.0, %v1340
  %v1342 = vpop.f32.mrf.mxu0
  %1343 = vmatprep.mubr.bf16.mxu0 0
  %1344 = vmatmul.mubr.bf16.gmra.mxu0 %v296
  %v1345 = vpop.f32.mrf.mxu0
  %v1346 = vadd.f32 0.0, %v1345
  %v1347 = vpop.f32.mrf.mxu0
  %v1348 = vpop.f32.mrf.mxu0
  %v1349 = vadd.f32 0.0, %v1348
  %v1350 = vpop.f32.mrf.mxu0
  %1351 = vdwg.mxu0
  %1355 = vrot.lane.b32.xlu0 %v1341, 32
  %v1356 = vpop.permute.xlu0 %1355
  %1357 = vrot.lane.b32.xlu0 %v1346, 32
  %v1358 = vpop.permute.xlu0 %1357
  %1359 = vrot.lane.b32.xlu0 %v1349, 32
  %v1360 = vpop.permute.xlu0 %1359
  %1364 = vrot.lane.b32.xlu0 %v1341, 64
  %v1365 = vpop.permute.xlu0 %1364
  %1366 = vrot.lane.b32.xlu0 %v1346, 64
  %v1367 = vpop.permute.xlu0 %1366
  %1368 = vrot.lane.b32.xlu0 %v1349, 64
  %v1369 = vpop.permute.xlu0 %1368
  %1376 = vrot.lane.b32.xlu0 %v1330, 96
  %v1377 = vpop.permute.xlu0 %1376
  %1378 = vrot.lane.b32.xlu0 %v1333, 96
  %v1379 = vpop.permute.xlu0 %1378
  %1380 = vrot.lane.b32.xlu0 %v1338, 96
  %v1381 = vpop.permute.xlu0 %1380
  %v1385 = vsel %vm492, %v1330, %v1356
  %v1386 = vsel %vm492, %v1333, %v1358
  %v1387 = vsel %vm492, %v1338, %v1360
  %v1388 = vsel %vm796, %v1385, %v1365
  %v1389 = vsel %vm796, %v1386, %v1367
  %v1390 = vsel %vm796, %v1387, %v1369
  %v1391 = vsel %vm800, %v1388, %v1377
  %v1392 = vsel %vm800, %v1389, %v1379
  %v1393 = vsel %vm800, %v1390, %v1381
  %v1394 = vpack.c.bf16 %v1392, %v1391
  %v1395 = vpack.c.bf16 %v1393, %v1393
  %v1396 = vld [vmem:[%s47] sm:$0xf]
  %v1397 = vld [vmem:[%s47 + $0x4] sm:$0xf]
  %v1398 = vld [vmem:[%s47 + $0x8] sm:$0xf]
  %v1399 = vld [vmem:[%s47 + $0xc] sm:$0xf]
  %v1400 = vld [vmem:[%s47 + $0x10] sm:$0xf]
  %v1401 = vld [vmem:[%s47 + $0x14] sm:$0xf]
  %v1402 = vld [vmem:[%s47 + $0x18] sm:$0xf]
  %v1403 = vld [vmem:[%s47 + $0x1c] sm:$0xf]
  %v1404 = vld [vmem:[%s47 + $0x20] sm:$0xf]
  %v1405 = vld [vmem:[%s47 + $0x24] sm:$0xf]
  %v1406 = vld [vmem:[%s47 + $0x28] sm:$0xf]
  %v1407 = vld [vmem:[%s47 + $0x2c] sm:$0xf]
  %v1408 = vld [vmem:[%s47 + $0x30] sm:$0xf]
  %v1409 = vld [vmem:[%s47 + $0x34] sm:$0xf]
  %v1410 = vld [vmem:[%s47 + $0x38] sm:$0xf]
  %v1411 = vld [vmem:[%s47 + $0x3c] sm:$0xf]
  %v1412 = vld [vmem:[%s47 + $0x40] sm:$0xf]
  %v1413 = vld [vmem:[%s47 + $0x44] sm:$0xf]
  %v1414 = vld [vmem:[%s47 + $0x48] sm:$0xf]
  %v1415 = vld [vmem:[%s47 + $0x4c] sm:$0xf]
  %v1416 = vld [vmem:[%s47 + $0x50] sm:$0xf]
  %v1417 = vld [vmem:[%s47 + $0x54] sm:$0xf]
  %v1418 = vld [vmem:[%s47 + $0x58] sm:$0xf]
  %v1419 = vld [vmem:[%s47 + $0x5c] sm:$0xf]
  %v1420 = vld [vmem:[%s49] sm:$0x1]
  %v1422 = vlaneseq
  %v1423 = vshrl.u32 %v1422, 7
  %v1424 = vsub.s32 0, %v1423
  %v1425 = vrot.slane %v1420, %v1424
  %v1451 = vunpack.c.l.b16 %v1396
  %v1452 = vunpack.c.l.b16 %v1397
  %v1453 = vunpack.c.l.b16 %v1398
  %v1454 = vunpack.c.l.b16 %v1399
  %v1455 = vunpack.c.l.b16 %v1400
  %v1456 = vunpack.c.l.b16 %v1401
  %v1457 = vunpack.c.l.b16 %v1402
  %v1458 = vunpack.c.l.b16 %v1403
  %v1459 = vunpack.c.l.b16 %v1404
  %v1460 = vunpack.c.l.b16 %v1405
  %v1461 = vunpack.c.l.b16 %v1406
  %v1462 = vunpack.c.l.b16 %v1407
  %v1463 = vunpack.c.l.b16 %v1408
  %v1464 = vunpack.c.l.b16 %v1409
  %v1465 = vunpack.c.l.b16 %v1410
  %v1466 = vunpack.c.l.b16 %v1411
  %v1467 = vunpack.c.l.b16 %v1412
  %v1468 = vunpack.c.l.b16 %v1413
  %v1469 = vunpack.c.l.b16 %v1414
  %v1470 = vunpack.c.l.b16 %v1415
  %v1471 = vunpack.c.l.b16 %v1416
  %v1472 = vunpack.c.l.b16 %v1417
  %v1473 = vunpack.c.l.b16 %v1418
  %v1474 = vunpack.c.l.b16 %v1419
  %v1475 = vpack.c.b16 %v1452, %v1451
  %v1476 = vpack.c.b16 %v1454, %v1453
  %v1477 = vpack.c.b16 %v1456, %v1455
  %v1478 = vpack.c.b16 %v1458, %v1457
  %v1479 = vpack.c.b16 %v1460, %v1459
  %v1480 = vpack.c.b16 %v1462, %v1461
  %v1481 = vpack.c.b16 %v1464, %v1463
  %v1482 = vpack.c.b16 %v1466, %v1465
  %v1483 = vpack.c.b16 %v1468, %v1467
  %v1484 = vpack.c.b16 %v1470, %v1469
  %v1485 = vpack.c.b16 %v1472, %v1471
  %v1486 = vpack.c.b16 %v1474, %v1473
  %v1500 = vsel %vm796, %v1063, 0
  %v1502 = vsel %vm796, %v1064, 0
  %1504 = vmatprep.subr.bf16.mxu0 0
  %1505 = vmatpush1.bf16.msra.mxu0 %v1482
  %1506 = vmatprep.subr.bf16.mxu0 0
  %1507 = vmatpush1.bf16.msra.mxu0 %v1481
  %1508 = vmatprep.subr.bf16.mxu0 0
  %1509 = vmatpush1.bf16.msra.mxu0 %v1480
  %1510 = vmatprep.subr.bf16.mxu0 0
  %1511 = vmatpush1.bf16.msra.mxu0 %v1479
  %1512 = vmatprep.subr.bf16.mxu0 0
  %1513 = vmatpush1.bf16.msra.mxu0 %v1478
  %1514 = vmatprep.subr.bf16.mxu0 0
  %1515 = vmatpush1.bf16.msra.mxu0 %v1477
  %1516 = vmatprep.subr.bf16.mxu0 0
  %1517 = vmatpush1.bf16.msra.mxu0 %v1476
  %1518 = vmatprep.subr.bf16.mxu0 0
  %1519 = vmatpush1.bf16.msra.mxu0 %v1475
  %1520 = vmatprep.subr.bf16.mxu0 0
  %1521 = vmatpush2.bf16.msra.mxu0 0
  %1522 = vmatprep.subr.bf16.mxu0 0
  %1523 = vmatpush2.bf16.msra.mxu0 0
  %1524 = vmatprep.subr.bf16.mxu0 0
  %1525 = vmatpush2.bf16.msra.mxu0 0
  %1526 = vmatprep.subr.bf16.mxu0 0
  %1527 = vmatpush2.bf16.msra.mxu0 0
  %1528 = vmatprep.subr.bf16.mxu0 0
  %1529 = vmatpush2.bf16.msra.mxu0 %v1486
  %1530 = vmatprep.subr.bf16.mxu0 0
  %1531 = vmatpush2.bf16.msra.mxu0 %v1485
  %1532 = vmatprep.subr.bf16.mxu0 0
  %1533 = vmatpush2.bf16.msra.mxu0 %v1484
  %1534 = vmatprep.subr.bf16.mxu0 0
  %1535 = vmatpush2.bf16.msra.mxu0 %v1483
  %1536 = vmatprep.mubr.bf16.mxu0 %v1500
  %1537 = vmatmul.mubr.bf16.gmra.mxu0 %v1394
  %v1538 = vpop.f32.mrf.mxu0
  %v1539 = vadd.f32 %v1425, %v1538
  %v1540 = vpop.f32.mrf.mxu0
  %v1541 = vpop.f32.mrf.mxu0
  %v1542 = vadd.f32 %v1425, %v1541
  %v1543 = vpop.f32.mrf.mxu0
  %1544 = vmatprep.mubr.bf16.mxu0 %v1502
  %1545 = vmatmul.mubr.bf16.gmra.mxu0 %v1395
  %v1546 = vpop.f32.mrf.mxu0
  %v1547 = vadd.f32 %v1425, %v1546
  %v1548 = vpop.f32.mrf.mxu0
  %v1549 = vpop.f32.mrf.mxu0
  %v1550 = vpop.f32.mrf.mxu0
  %1551 = vdwg.mxu0
  %v1552 = vmax.f32 %v1539, 0.0
  %v1553 = vmax.f32 %v1542, 0.0
  %v1554 = vmax.f32 %v1547, 0.0
  %v1555 = vpack.c.bf16 %v1553, %v1552
  %v1556 = vpack.c.bf16 %v1554, %v1554
  %v1557 = vld [vmem:[%s51] sm:$0xf]
  %v1558 = vld [vmem:[%s51 + $0x4] sm:$0xf]
  %v1559 = vld [vmem:[%s51 + $0x8] sm:$0xf]
  %v1560 = vld [vmem:[%s51 + $0xc] sm:$0xf]
  %v1561 = vld [vmem:[%s51 + $0x10] sm:$0xf]
  %v1562 = vld [vmem:[%s51 + $0x14] sm:$0xf]
  %v1563 = vld [vmem:[%s51 + $0x18] sm:$0xf]
  %v1564 = vld [vmem:[%s51 + $0x1c] sm:$0xf]
  %v1565 = vld [vmem:[%s53] sm:$0x1]
  %v1567 = vlaneseq
  %v1568 = vshrl.u32 %v1567, 7
  %v1569 = vsub.s32 0, %v1568
  %v1570 = vrot.slane %v1565, %v1569
  %v1580 = vunpack.c.l.b16 %v1557
  %v1581 = vunpack.c.l.b16 %v1558
  %v1582 = vunpack.c.l.b16 %v1559
  %v1583 = vunpack.c.l.b16 %v1560
  %v1584 = vunpack.c.l.b16 %v1561
  %v1585 = vunpack.c.l.b16 %v1562
  %v1586 = vunpack.c.l.b16 %v1563
  %v1587 = vunpack.c.l.b16 %v1564
  %v1588 = vpack.c.b16 %v1581, %v1580
  %v1589 = vpack.c.b16 %v1583, %v1582
  %v1590 = vpack.c.b16 %v1585, %v1584
  %v1591 = vpack.c.b16 %v1587, %v1586
  %v1597 = vsel %vm796, %v1555, 0
  %v1600 = vsel %vm796, %v1556, 0
  %1602 = vmatprep.subr.bf16.mxu0 0
  %1603 = vmatpush1.bf16.msra.mxu0 0
  %1604 = vmatprep.subr.bf16.mxu0 0
  %1605 = vmatpush1.bf16.msra.mxu0 0
  %1606 = vmatprep.subr.bf16.mxu0 0
  %1607 = vmatpush1.bf16.msra.mxu0 0
  %1608 = vmatprep.subr.bf16.mxu0 0
  %1609 = vmatpush1.bf16.msra.mxu0 0
  %1610 = vmatprep.subr.bf16.mxu0 0
  %1611 = vmatpush1.bf16.msra.mxu0 %v1591
  %1612 = vmatprep.subr.bf16.mxu0 0
  %1613 = vmatpush1.bf16.msra.mxu0 %v1590
  %1614 = vmatprep.subr.bf16.mxu0 0
  %1615 = vmatpush1.bf16.msra.mxu0 %v1589
  %1616 = vmatprep.subr.bf16.mxu0 0
  %1617 = vmatpush1.bf16.msra.mxu0 %v1588
  %1618 = vmatprep.subr.bf16.mxu0 0
  %1619 = vmatpush2.bf16.msra.mxu0 0
  %1620 = vmatprep.subr.bf16.mxu0 0
  %1621 = vmatpush2.bf16.msra.mxu0 0
  %1622 = vmatprep.subr.bf16.mxu0 0
  %1623 = vmatpush2.bf16.msra.mxu0 0
  %1624 = vmatprep.subr.bf16.mxu0 0
  %1625 = vmatpush2.bf16.msra.mxu0 0
  %1626 = vmatprep.subr.bf16.mxu0 0
  %1627 = vmatpush2.bf16.msra.mxu0 0
  %1628 = vmatprep.subr.bf16.mxu0 0
  %1629 = vmatpush2.bf16.msra.mxu0 0
  %1630 = vmatprep.subr.bf16.mxu0 0
  %1631 = vmatpush2.bf16.msra.mxu0 0
  %1632 = vmatprep.subr.bf16.mxu0 0
  %1633 = vmatpush2.bf16.msra.mxu0 0
  %1634 = vmatprep.mubr.bf16.mxu0 0
  %1635 = vmatmul.mubr.bf16.gmra.mxu0 %v1597
  %v1636 = vpop.f32.mrf.mxu0
  %v1637 = vadd.f32 %v1570, %v1636
  %v1638 = vpop.f32.mrf.mxu0
  %v1639 = vpop.f32.mrf.mxu0
  %v1640 = vadd.f32 %v1570, %v1639
  %v1641 = vpop.f32.mrf.mxu0
  %1642 = vmatprep.mubr.bf16.mxu0 0
  %1643 = vmatmul.mubr.bf16.gmra.mxu0 %v1600
  %v1644 = vpop.f32.mrf.mxu0
  %v1645 = vadd.f32 %v1570, %v1644
  %v1646 = vpop.f32.mrf.mxu0
  %v1647 = vpop.f32.mrf.mxu0
  %v1648 = vpop.f32.mrf.mxu0
  %1649 = vdwg.mxu0
  %v1650 = vpack.c.bf16 %v1640, %v1637
  %v1651 = vpack.c.bf16 %v1645, %v1645
  %v1653 = vsel %vm1069, %v1651, 0
  %1655 = vmatprep.subr.bf16.mxu0 0
  %1656 = vmatpush1.bf16.msra.mxu0 0
  %1657 = vmatprep.subr.bf16.mxu0 0
  %1658 = vmatpush1.bf16.msra.mxu0 0
  %1659 = vmatprep.subr.bf16.mxu0 0
  %1660 = vmatpush1.bf16.msra.mxu0 0
  %1661 = vmatprep.subr.bf16.mxu0 0
  %1662 = vmatpush1.bf16.msra.mxu0 0
  %1663 = vmatprep.subr.bf16.mxu0 0
  %1664 = vmatpush1.bf16.msra.mxu0 0
  %1665 = vmatprep.subr.bf16.mxu0 0
  %1666 = vmatpush1.bf16.msra.mxu0 0
  %1667 = vmatprep.subr.bf16.mxu0 0
  %1668 = vmatpush1.bf16.msra.mxu0 %v1653
  %1669 = vmatprep.subr.bf16.mxu0 0
  %1670 = vmatpush1.bf16.msra.mxu0 %v1650
  %1671 = vmatprep.subr.bf16.mxu0 0
  %1672 = vmatpush2.bf16.msra.mxu0 0
  %1673 = vmatprep.subr.bf16.mxu0 0
  %1674 = vmatpush2.bf16.msra.mxu0 0
  %1675 = vmatprep.subr.bf16.mxu0 0
  %1676 = vmatpush2.bf16.msra.mxu0 0
  %1677 = vmatprep.subr.bf16.mxu0 0
  %1678 = vmatpush2.bf16.msra.mxu0 0
  %1679 = vmatprep.subr.bf16.mxu0 0
  %1680 = vmatpush2.bf16.msra.mxu0 0
  %1681 = vmatprep.subr.bf16.mxu0 0
  %1682 = vmatpush2.bf16.msra.mxu0 0
  %1683 = vmatprep.subr.bf16.mxu0 0
  %1684 = vmatpush2.bf16.msra.mxu0 0
  %1685 = vmatprep.subr.bf16.mxu0 0
  %1686 = vmatpush2.bf16.msra.mxu0 0
  %1687 = vmatprep.mubr.bf16.mxu0 0
  %1688 = vmatmul.mubr.bf16.gmra.mxu0 %v1067
  %v1689 = vpop.f32.mrf.mxu0
  %v1690 = vadd.f32 0.0, %v1689
  %v1691 = vpop.f32.mrf.mxu0
  %v1692 = vpop.f32.mrf.mxu0
  %v1693 = vadd.f32 0.0, %v1692
  %v1694 = vpop.f32.mrf.mxu0
  %1695 = vdwg.mxu0
  %1698 = vrot.lane.b32.xlu0 %v1690, 32
  %v1699 = vpop.permute.xlu0 %1698
  %1700 = vrot.lane.b32.xlu0 %v1693, 32
  %v1701 = vpop.permute.xlu0 %1700
  %v1704 = vsel %vm492, %v1288, %v1699
  %v1705 = vsel %vm492, %v1291, %v1701
  %v1706 = vpack.c.bf16 %v1705, %v1704
  %v1707 = vld [vmem:[%s55] sm:$0xf]
  %v1708 = vld [vmem:[%s55 + $0x4] sm:$0xf]
  %v1709 = vld [vmem:[%s55 + $0x8] sm:$0xf]
  %v1710 = vld [vmem:[%s55 + $0xc] sm:$0xf]
  %v1711 = vld [vmem:[%s55 + $0x10] sm:$0xf]
  %v1712 = vld [vmem:[%s55 + $0x14] sm:$0xf]
  %v1713 = vld [vmem:[%s55 + $0x18] sm:$0xf]
  %v1714 = vld [vmem:[%s55 + $0x1c] sm:$0xf]
  %v1715 = vld [vmem:[%s55 + $0x20] sm:$0xf]
  %v1716 = vld [vmem:[%s55 + $0x24] sm:$0xf]
  %v1717 = vld [vmem:[%s55 + $0x28] sm:$0xf]
  %v1718 = vld [vmem:[%s55 + $0x2c] sm:$0xf]
  %v1719 = vld [vmem:[%s57] sm:$0x1]
  %v1721 = vlaneseq
  %v1722 = vshrl.u32 %v1721, 7
  %v1723 = vsub.s32 0, %v1722
  %v1724 = vrot.slane %v1719, %v1723
  %v1738 = vunpack.c.l.b16 %v1707
  %v1739 = vunpack.c.l.b16 %v1708
  %v1740 = vunpack.c.l.b16 %v1709
  %v1741 = vunpack.c.l.b16 %v1710
  %v1742 = vunpack.c.l.b16 %v1711
  %v1743 = vunpack.c.l.b16 %v1712
  %v1744 = vunpack.c.l.b16 %v1713
  %v1745 = vunpack.c.l.b16 %v1714
  %v1746 = vunpack.c.l.b16 %v1715
  %v1747 = vunpack.c.l.b16 %v1716
  %v1748 = vunpack.c.l.b16 %v1717
  %v1749 = vunpack.c.l.b16 %v1718
  %v1750 = vpack.c.b16 %v1739, %v1738
  %v1751 = vpack.c.b16 %v1741, %v1740
  %v1752 = vpack.c.b16 %v1743, %v1742
  %v1753 = vpack.c.b16 %v1745, %v1744
  %v1754 = vpack.c.b16 %v1747, %v1746
  %v1755 = vpack.c.b16 %v1749, %v1748
  %v1763 = vsel %vm800, %v1706, 0
  %1765 = vmatprep.subr.bf16.mxu0 0
  %1766 = vmatpush1.bf16.msra.mxu0 0
  %1767 = vmatprep.subr.bf16.mxu0 0
  %1768 = vmatpush1.bf16.msra.mxu0 0
  %1769 = vmatprep.subr.bf16.mxu0 0
  %1770 = vmatpush1.bf16.msra.mxu0 %v1755
  %1771 = vmatprep.subr.bf16.mxu0 0
  %1772 = vmatpush1.bf16.msra.mxu0 %v1754
  %1773 = vmatprep.subr.bf16.mxu0 0
  %1774 = vmatpush1.bf16.msra.mxu0 %v1753
  %1775 = vmatprep.subr.bf16.mxu0 0
  %1776 = vmatpush1.bf16.msra.mxu0 %v1752
  %1777 = vmatprep.subr.bf16.mxu0 0
  %1778 = vmatpush1.bf16.msra.mxu0 %v1751
  %1779 = vmatprep.subr.bf16.mxu0 0
  %1780 = vmatpush1.bf16.msra.mxu0 %v1750
  %1781 = vmatprep.subr.bf16.mxu0 0
  %1782 = vmatpush2.bf16.msra.mxu0 0
  %1783 = vmatprep.subr.bf16.mxu0 0
  %1784 = vmatpush2.bf16.msra.mxu0 0
  %1785 = vmatprep.subr.bf16.mxu0 0
  %1786 = vmatpush2.bf16.msra.mxu0 0
  %1787 = vmatprep.subr.bf16.mxu0 0
  %1788 = vmatpush2.bf16.msra.mxu0 0
  %1789 = vmatprep.subr.bf16.mxu0 0
  %1790 = vmatpush2.bf16.msra.mxu0 0
  %1791 = vmatprep.subr.bf16.mxu0 0
  %1792 = vmatpush2.bf16.msra.mxu0 0
  %1793 = vmatprep.subr.bf16.mxu0 0
  %1794 = vmatpush2.bf16.msra.mxu0 0
  %1795 = vmatprep.subr.bf16.mxu0 0
  %1796 = vmatpush2.bf16.msra.mxu0 0
  %1797 = vmatprep.mubr.bf16.mxu0 0
  %1798 = vmatmul.mubr.bf16.gmra.mxu0 %v1763
  %v1799 = vpop.f32.mrf.mxu0
  %v1800 = vadd.f32 %v1724, %v1799
  %v1801 = vpop.f32.mrf.mxu0
  %v1802 = vpop.f32.mrf.mxu0
  %v1803 = vadd.f32 %v1724, %v1802
  %v1804 = vpop.f32.mrf.mxu0
  %1805 = vdwg.mxu0
  %v1806 = vmax.f32 %v1800, 0.0
  %v1807 = vmax.f32 %v1803, 0.0
  %v1808 = vpack.c.bf16 %v1807, %v1806
  %v1809 = vld [vmem:[%s59] sm:$0xf]
  %v1810 = vld [vmem:[%s59 + $0x4] sm:$0xf]
  %v1811 = vld [vmem:[%s59 + $0x8] sm:$0xf]
  %v1812 = vld [vmem:[%s59 + $0xc] sm:$0xf]
  %v1813 = vld [vmem:[%s61] sm:$0x1]
  %v1815 = vlaneseq
  %v1816 = vshrl.u32 %v1815, 7
  %v1817 = vsub.s32 0, %v1816
  %v1818 = vrot.slane %v1813, %v1817
  %v1824 = vunpack.c.l.b16 %v1809
  %v1825 = vunpack.c.l.b16 %v1810
  %v1826 = vunpack.c.l.b16 %v1811
  %v1827 = vunpack.c.l.b16 %v1812
  %v1828 = vpack.c.b16 %v1825, %v1824
  %v1829 = vpack.c.b16 %v1827, %v1826
  %v1833 = vsel %vm492, %v1808, 0
  %1835 = vmatprep.subr.bf16.mxu0 0
  %1836 = vmatpush1.bf16.msra.mxu0 0
  %1837 = vmatprep.subr.bf16.mxu0 0
  %1838 = vmatpush1.bf16.msra.mxu0 0
  %1839 = vmatprep.subr.bf16.mxu0 0
  %1840 = vmatpush1.bf16.msra.mxu0 0
  %1841 = vmatprep.subr.bf16.mxu0 0
  %1842 = vmatpush1.bf16.msra.mxu0 0
  %1843 = vmatprep.subr.bf16.mxu0 0
  %1844 = vmatpush1.bf16.msra.mxu0 0
  %1845 = vmatprep.subr.bf16.mxu0 0
  %1846 = vmatpush1.bf16.msra.mxu0 0
  %1847 = vmatprep.subr.bf16.mxu0 0
  %1848 = vmatpush1.bf16.msra.mxu0 %v1829
  %1849 = vmatprep.subr.bf16.mxu0 0
  %1850 = vmatpush1.bf16.msra.mxu0 %v1828
  %1851 = vmatprep.subr.bf16.mxu0 0
  %1852 = vmatpush2.bf16.msra.mxu0 0
  %1853 = vmatprep.subr.bf16.mxu0 0
  %1854 = vmatpush2.bf16.msra.mxu0 0
  %1855 = vmatprep.subr.bf16.mxu0 0
  %1856 = vmatpush2.bf16.msra.mxu0 0
  %1857 = vmatprep.subr.bf16.mxu0 0
  %1858 = vmatpush2.bf16.msra.mxu0 0
  %1859 = vmatprep.subr.bf16.mxu0 0
  %1860 = vmatpush2.bf16.msra.mxu0 0
  %1861 = vmatprep.subr.bf16.mxu0 0
  %1862 = vmatpush2.bf16.msra.mxu0 0
  %1863 = vmatprep.subr.bf16.mxu0 0
  %1864 = vmatpush2.bf16.msra.mxu0 0
  %1865 = vmatprep.subr.bf16.mxu0 0
  %1866 = vmatpush2.bf16.msra.mxu0 0
  %1867 = vmatprep.mubr.bf16.mxu0 0
  %1868 = vmatmul.mubr.bf16.gmra.mxu0 %v1833
  %v1869 = vpop.f32.mrf.mxu0
  %v1870 = vadd.f32 %v1818, %v1869
  %v1871 = vpop.f32.mrf.mxu0
  %v1872 = vpop.f32.mrf.mxu0
  %v1873 = vadd.f32 %v1818, %v1872
  %v1874 = vpop.f32.mrf.mxu0
  %1875 = vdwg.mxu0
  %v1876 = vpack.c.bf16 %v1873, %v1870
  %v1877 = vld [vmem:[%s63] sm:$0xf]
  %v1878 = vld [vmem:[%s63 + $0x4] sm:$0xf]
  %v1879 = vld [vmem:[%s63 + $0x8] sm:$0xf]
  %v1880 = vld [vmem:[%s63 + $0xc] sm:$0xf]
  %v1881 = vld [vmem:[%s65] sm:$0x1]
  %v1883 = vlaneseq
  %v1884 = vshrl.u32 %v1883, 7
  %v1885 = vsub.s32 0, %v1884
  %v1886 = vrot.slane %v1881, %v1885
  %v1892 = vunpack.c.l.b16 %v1877
  %v1893 = vunpack.c.l.b16 %v1878
  %v1894 = vunpack.c.l.b16 %v1879
  %v1895 = vunpack.c.l.b16 %v1880
  %v1896 = vpack.c.b16 %v1893, %v1892
  %v1897 = vpack.c.b16 %v1895, %v1894
  %v1901 = vsel %vm492, %v1876, 0
  %1903 = vmatprep.subr.bf16.mxu0 0
  %1904 = vmatpush1.bf16.msra.mxu0 0
  %1905 = vmatprep.subr.bf16.mxu0 0
  %1906 = vmatpush1.bf16.msra.mxu0 0
  %1907 = vmatprep.subr.bf16.mxu0 0
  %1908 = vmatpush1.bf16.msra.mxu0 0
  %1909 = vmatprep.subr.bf16.mxu0 0
  %1910 = vmatpush1.bf16.msra.mxu0 0
  %1911 = vmatprep.subr.bf16.mxu0 0
  %1912 = vmatpush1.bf16.msra.mxu0 0
  %1913 = vmatprep.subr.bf16.mxu0 0
  %1914 = vmatpush1.bf16.msra.mxu0 0
  %1915 = vmatprep.subr.bf16.mxu0 0
  %1916 = vmatpush1.bf16.msra.mxu0 %v1897
  %1917 = vmatprep.subr.bf16.mxu0 0
  %1918 = vmatpush1.bf16.msra.mxu0 %v1896
  %1919 = vmatprep.subr.bf16.mxu0 0
  %1920 = vmatpush2.bf16.msra.mxu0 0
  %1921 = vmatprep.subr.bf16.mxu0 0
  %1922 = vmatpush2.bf16.msra.mxu0 0
  %1923 = vmatprep.subr.bf16.mxu0 0
  %1924 = vmatpush2.bf16.msra.mxu0 0
  %1925 = vmatprep.subr.bf16.mxu0 0
  %1926 = vmatpush2.bf16.msra.mxu0 0
  %1927 = vmatprep.subr.bf16.mxu0 0
  %1928 = vmatpush2.bf16.msra.mxu0 0
  %1929 = vmatprep.subr.bf16.mxu0 0
  %1930 = vmatpush2.bf16.msra.mxu0 0
  %1931 = vmatprep.subr.bf16.mxu0 0
  %1932 = vmatpush2.bf16.msra.mxu0 0
  %1933 = vmatprep.subr.bf16.mxu0 0
  %1934 = vmatpush2.bf16.msra.mxu0 0
  %1935 = vmatprep.mubr.bf16.mxu0 0
  %1936 = vmatmul.mubr.bf16.gmra.mxu0 %v1901
  %v1937 = vpop.f32.mrf.mxu0
  %v1938 = vadd.f32 %v1886, %v1937
  %v1939 = vpop.f32.mrf.mxu0
  %v1940 = vpop.f32.mrf.mxu0
  %v1941 = vadd.f32 %v1886, %v1940
  %v1942 = vpop.f32.mrf.mxu0
  %1943 = vdwg.mxu0
  %v1944 = vxor.u32 %v1938, 2147483648
  %v1945 = vxor.u32 %v1941, 2147483648
  %v1946 = vmul.f32 %v1944, 1.442695
  %v1947 = vpow.pop %v1946
  %v1948 = vmul.f32 %v1945, 1.442695
  %v1949 = vpow.pop %v1948
  %v1950 = vadd.f32 %v1947, 1.0
  %v1951 = vadd.f32 %v1949, 1.0
  %v1952 = vrcp.pop %v1950
  %v1953 = vmul.f32 1.0, %v1952
  %v1954 = vrcp.pop %v1951
  %v1955 = vmul.f32 1.0, %v1954
  %v1956 = vmul.f32 %v1938, %v1953
  %v1957 = vmul.f32 %v1941, %v1955
  %v1958 = vpack.c.bf16 %v1957, %v1956
  %v1959 = vld [vmem:[%s67] sm:$0xf]
  %v1960 = vld [vmem:[%s67 + $0x4] sm:$0xf]
  %v1961 = vld [vmem:[%s67 + $0x8] sm:$0xf]
  %v1962 = vld [vmem:[%s67 + $0xc] sm:$0xf]
  %v1963 = vld [vmem:[%s69] sm:$0x1]
  %v1965 = vlaneseq
  %v1966 = vshrl.u32 %v1965, 7
  %v1967 = vsub.s32 0, %v1966
  %v1968 = vrot.slane %v1963, %v1967
  %v1974 = vunpack.c.l.b16 %v1959
  %v1975 = vunpack.c.l.b16 %v1960
  %v1976 = vunpack.c.l.b16 %v1961
  %v1977 = vunpack.c.l.b16 %v1962
  %v1978 = vpack.c.b16 %v1975, %v1974
  %v1979 = vpack.c.b16 %v1977, %v1976
  %v1983 = vsel %vm492, %v1958, 0
  %1985 = vmatprep.subr.bf16.mxu0 0
  %1986 = vmatpush1.bf16.msra.mxu0 0
  %1987 = vmatprep.subr.bf16.mxu0 0
  %1988 = vmatpush1.bf16.msra.mxu0 0
  %1989 = vmatprep.subr.bf16.mxu0 0
  %1990 = vmatpush1.bf16.msra.mxu0 0
  %1991 = vmatprep.subr.bf16.mxu0 0
  %1992 = vmatpush1.bf16.msra.mxu0 0
  %1993 = vmatprep.subr.bf16.mxu0 0
  %1994 = vmatpush1.bf16.msra.mxu0 0
  %1995 = vmatprep.subr.bf16.mxu0 0
  %1996 = vmatpush1.bf16.msra.mxu0 0
  %1997 = vmatprep.subr.bf16.mxu0 0
  %1998 = vmatpush1.bf16.msra.mxu0 %v1979
  %1999 = vmatprep.subr.bf16.mxu0 0
  %2000 = vmatpush1.bf16.msra.mxu0 %v1978
  %2001 = vmatprep.subr.bf16.mxu0 0
  %2002 = vmatpush2.bf16.msra.mxu0 0
  %2003 = vmatprep.subr.bf16.mxu0 0
  %2004 = vmatpush2.bf16.msra.mxu0 0
  %2005 = vmatprep.subr.bf16.mxu0 0
  %2006 = vmatpush2.bf16.msra.mxu0 0
  %2007 = vmatprep.subr.bf16.mxu0 0
  %2008 = vmatpush2.bf16.msra.mxu0 0
  %2009 = vmatprep.subr.bf16.mxu0 0
  %2010 = vmatpush2.bf16.msra.mxu0 0
  %2011 = vmatprep.subr.bf16.mxu0 0
  %2012 = vmatpush2.bf16.msra.mxu0 0
  %2013 = vmatprep.subr.bf16.mxu0 0
  %2014 = vmatpush2.bf16.msra.mxu0 0
  %2015 = vmatprep.subr.bf16.mxu0 0
  %2016 = vmatpush2.bf16.msra.mxu0 0
  %2017 = vmatprep.mubr.bf16.mxu0 0
  %2018 = vmatmul.mubr.bf16.gmra.mxu0 %v1983
  %v2019 = vpop.f32.mrf.mxu0
  %v2020 = vadd.f32 %v1968, %v2019
  %v2021 = vpop.f32.mrf.mxu0
  %v2022 = vpop.f32.mrf.mxu0
  %v2023 = vadd.f32 %v1968, %v2022
  %v2024 = vpop.f32.mrf.mxu0
  %2025 = vdwg.mxu0
  %v2026 = vld [vmem:[%s71] sm:$0xf]
  %v2027 = vld [vmem:[%s71 + $0x4] sm:$0xf]
  %v2028 = vld [vmem:[%s71 + $0x8] sm:$0xf]
  %v2029 = vld [vmem:[%s71 + $0xc] sm:$0xf]
  %v2030 = vld [vmem:[%s71 + $0x10] sm:$0xf]
  %v2031 = vld [vmem:[%s71 + $0x14] sm:$0xf]
  %v2032 = vld [vmem:[%s71 + $0x18] sm:$0xf]
  %v2033 = vld [vmem:[%s71 + $0x1c] sm:$0xf]
  %v2034 = vld [vmem:[%s73] sm:$0x1]
  %v2036 = vlaneseq
  %v2037 = vshrl.u32 %v2036, 7
  %v2038 = vsub.s32 0, %v2037
  %v2039 = vrot.slane %v2034, %v2038
  %v2049 = vunpack.c.l.b16 %v2026
  %v2050 = vunpack.c.l.b16 %v2027
  %v2051 = vunpack.c.l.b16 %v2028
  %v2052 = vunpack.c.l.b16 %v2029
  %v2053 = vunpack.c.l.b16 %v2030
  %v2054 = vunpack.c.l.b16 %v2031
  %v2055 = vunpack.c.l.b16 %v2032
  %v2056 = vunpack.c.l.b16 %v2033
  %v2057 = vpack.c.b16 %v2050, %v2049
  %v2058 = vpack.c.b16 %v2052, %v2051
  %v2059 = vpack.c.b16 %v2054, %v2053
  %v2060 = vpack.c.b16 %v2056, %v2055
  %v2066 = vsel %vm796, %v1650, 0
  %v2068 = vsel %vm796, %v1651, 0
  %2070 = vmatprep.subr.bf16.mxu0 0
  %2071 = vmatpush1.bf16.msra.mxu0 0
  %2072 = vmatprep.subr.bf16.mxu0 0
  %2073 = vmatpush1.bf16.msra.mxu0 0
  %2074 = vmatprep.subr.bf16.mxu0 0
  %2075 = vmatpush1.bf16.msra.mxu0 0
  %2076 = vmatprep.subr.bf16.mxu0 0
  %2077 = vmatpush1.bf16.msra.mxu0 0
  %2078 = vmatprep.subr.bf16.mxu0 0
  %2079 = vmatpush1.bf16.msra.mxu0 %v2060
  %2080 = vmatprep.subr.bf16.mxu0 0
  %2081 = vmatpush1.bf16.msra.mxu0 %v2059
  %2082 = vmatprep.subr.bf16.mxu0 0
  %2083 = vmatpush1.bf16.msra.mxu0 %v2058
  %2084 = vmatprep.subr.bf16.mxu0 0
  %2085 = vmatpush1.bf16.msra.mxu0 %v2057
  %2086 = vmatprep.subr.bf16.mxu0 0
  %2087 = vmatpush2.bf16.msra.mxu0 0
  %2088 = vmatprep.subr.bf16.mxu0 0
  %2089 = vmatpush2.bf16.msra.mxu0 0
  %2090 = vmatprep.subr.bf16.mxu0 0
  %2091 = vmatpush2.bf16.msra.mxu0 0
  %2092 = vmatprep.subr.bf16.mxu0 0
  %2093 = vmatpush2.bf16.msra.mxu0 0
  %2094 = vmatprep.subr.bf16.mxu0 0
  %2095 = vmatpush2.bf16.msra.mxu0 0
  %2096 = vmatprep.subr.bf16.mxu0 0
  %2097 = vmatpush2.bf16.msra.mxu0 0
  %2098 = vmatprep.subr.bf16.mxu0 0
  %2099 = vmatpush2.bf16.msra.mxu0 0
  %2100 = vmatprep.subr.bf16.mxu0 0
  %2101 = vmatpush2.bf16.msra.mxu0 0
  %2102 = vmatprep.mubr.bf16.mxu0 0
  %2103 = vmatmul.mubr.bf16.gmra.mxu0 %v2066
  %v2104 = vpop.f32.mrf.mxu0
  %v2105 = vadd.f32 %v2039, %v2104
  %v2106 = vpop.f32.mrf.mxu0
  %v2107 = vpop.f32.mrf.mxu0
  %v2108 = vadd.f32 %v2039, %v2107
  %v2109 = vpop.f32.mrf.mxu0
  %2110 = vmatprep.mubr.bf16.mxu0 0
  %2111 = vmatmul.mubr.bf16.gmra.mxu0 %v2068
  %v2112 = vpop.f32.mrf.mxu0
  %v2113 = vadd.f32 %v2039, %v2112
  %v2114 = vpop.f32.mrf.mxu0
  %v2115 = vpop.f32.mrf.mxu0
  %v2116 = vpop.f32.mrf.mxu0
  %2117 = vdwg.mxu0
  %v2118 = vxor.u32 %v2105, 2147483648
  %v2119 = vxor.u32 %v2108, 2147483648
  %v2120 = vxor.u32 %v2113, 2147483648
  %v2121 = vmul.f32 %v2118, 1.442695
  %v2122 = vpow.pop %v2121
  %v2123 = vmul.f32 %v2119, 1.442695
  %v2124 = vpow.pop %v2123
  %v2125 = vmul.f32 %v2120, 1.442695
  %v2126 = vpow.pop %v2125
  %v2127 = vadd.f32 %v2122, 1.0
  %v2128 = vadd.f32 %v2124, 1.0
  %v2129 = vadd.f32 %v2126, 1.0
  %v2130 = vrcp.pop %v2127
  %v2131 = vmul.f32 1.0, %v2130
  %v2132 = vrcp.pop %v2128
  %v2133 = vmul.f32 1.0, %v2132
  %v2134 = vrcp.pop %v2129
  %v2135 = vmul.f32 1.0, %v2134
  %v2136 = vmul.f32 %v2105, %v2131
  %v2137 = vmul.f32 %v2108, %v2133
  %v2138 = vmul.f32 %v2113, %v2135
  %v2139 = vpack.c.bf16 %v2137, %v2136
  %v2140 = vpack.c.bf16 %v2138, %v2138
  %v2141 = vld [vmem:[%s75] sm:$0xf]
  %v2142 = vld [vmem:[%s75 + $0x4] sm:$0xf]
  %v2143 = vld [vmem:[%s75 + $0x8] sm:$0xf]
  %v2144 = vld [vmem:[%s75 + $0xc] sm:$0xf]
  %v2145 = vld [vmem:[%s77] sm:$0x1]
  %v2147 = vlaneseq
  %v2148 = vshrl.u32 %v2147, 7
  %v2149 = vsub.s32 0, %v2148
  %v2150 = vrot.slane %v2145, %v2149
  %v2156 = vunpack.c.l.b16 %v2141
  %v2157 = vunpack.c.l.b16 %v2142
  %v2158 = vunpack.c.l.b16 %v2143
  %v2159 = vunpack.c.l.b16 %v2144
  %v2160 = vpack.c.b16 %v2157, %v2156
  %v2161 = vpack.c.b16 %v2159, %v2158
  %v2165 = vsel %vm492, %v2139, 0
  %v2168 = vsel %vm492, %v2140, 0
  %2170 = vmatprep.subr.bf16.mxu0 0
  %2171 = vmatpush1.bf16.msra.mxu0 0
  %2172 = vmatprep.subr.bf16.mxu0 0
  %2173 = vmatpush1.bf16.msra.mxu0 0
  %2174 = vmatprep.subr.bf16.mxu0 0
  %2175 = vmatpush1.bf16.msra.mxu0 0
  %2176 = vmatprep.subr.bf16.mxu0 0
  %2177 = vmatpush1.bf16.msra.mxu0 0
  %2178 = vmatprep.subr.bf16.mxu0 0
  %2179 = vmatpush1.bf16.msra.mxu0 0
  %2180 = vmatprep.subr.bf16.mxu0 0
  %2181 = vmatpush1.bf16.msra.mxu0 0
  %2182 = vmatprep.subr.bf16.mxu0 0
  %2183 = vmatpush1.bf16.msra.mxu0 %v2161
  %2184 = vmatprep.subr.bf16.mxu0 0
  %2185 = vmatpush1.bf16.msra.mxu0 %v2160
  %2186 = vmatprep.subr.bf16.mxu0 0
  %2187 = vmatpush2.bf16.msra.mxu0 0
  %2188 = vmatprep.subr.bf16.mxu0 0
  %2189 = vmatpush2.bf16.msra.mxu0 0
  %2190 = vmatprep.subr.bf16.mxu0 0
  %2191 = vmatpush2.bf16.msra.mxu0 0
  %2192 = vmatprep.subr.bf16.mxu0 0
  %2193 = vmatpush2.bf16.msra.mxu0 0
  %2194 = vmatprep.subr.bf16.mxu0 0
  %2195 = vmatpush2.bf16.msra.mxu0 0
  %2196 = vmatprep.subr.bf16.mxu0 0
  %2197 = vmatpush2.bf16.msra.mxu0 0
  %2198 = vmatprep.subr.bf16.mxu0 0
  %2199 = vmatpush2.bf16.msra.mxu0 0
  %2200 = vmatprep.subr.bf16.mxu0 0
  %2201 = vmatpush2.bf16.msra.mxu0 0
  %2202 = vmatprep.mubr.bf16.mxu0 0
  %2203 = vmatmul.mubr.bf16.gmra.mxu0 %v2165
  %v2204 = vpop.f32.mrf.mxu0
  %v2205 = vadd.f32 %v2150, %v2204
  %v2206 = vpop.f32.mrf.mxu0
  %v2207 = vpop.f32.mrf.mxu0
  %v2208 = vadd.f32 %v2150, %v2207
  %v2209 = vpop.f32.mrf.mxu0
  %2210 = vmatprep.mubr.bf16.mxu0 0
  %2211 = vmatmul.mubr.bf16.gmra.mxu0 %v2168
  %v2212 = vpop.f32.mrf.mxu0
  %v2213 = vadd.f32 %v2150, %v2212
  %v2214 = vpop.f32.mrf.mxu0
  %v2215 = vpop.f32.mrf.mxu0
  %v2216 = vpop.f32.mrf.mxu0
  %2217 = vdwg.mxu0
  %v2218 = vpack.c.bf16 %v2023, %v2020
  %v2220 = vsel %vm288, %v256, 0
  %2222 = vmatprep.subr.bf16.mxu0 0
  %2223 = vmatpush1.bf16.msra.mxu0 0
  %2224 = vmatprep.subr.bf16.mxu0 0
  %2225 = vmatpush1.bf16.msra.mxu0 0
  %2226 = vmatprep.subr.bf16.mxu0 0
  %2227 = vmatpush1.bf16.msra.mxu0 0
  %2228 = vmatprep.subr.bf16.mxu0 0
  %2229 = vmatpush1.bf16.msra.mxu0 0
  %2230 = vmatprep.subr.bf16.mxu0 0
  %2231 = vmatpush1.bf16.msra.mxu0 0
  %2232 = vmatprep.subr.bf16.mxu0 0
  %2233 = vmatpush1.bf16.msra.mxu0 0
  %2234 = vmatprep.subr.bf16.mxu0 0
  %2235 = vmatpush1.bf16.msra.mxu0 0
  %2236 = vmatprep.subr.bf16.mxu0 0
  %2237 = vmatpush1.bf16.msra.mxu0 %v2218
  %2238 = vmatprep.subr.bf16.mxu0 0
  %2239 = vmatpush2.bf16.msra.mxu0 0
  %2240 = vmatprep.subr.bf16.mxu0 0
  %2241 = vmatpush2.bf16.msra.mxu0 0
  %2242 = vmatprep.subr.bf16.mxu0 0
  %2243 = vmatpush2.bf16.msra.mxu0 0
  %2244 = vmatprep.subr.bf16.mxu0 0
  %2245 = vmatpush2.bf16.msra.mxu0 0
  %2246 = vmatprep.subr.bf16.mxu0 0
  %2247 = vmatpush2.bf16.msra.mxu0 0
  %2248 = vmatprep.subr.bf16.mxu0 0
  %2249 = vmatpush2.bf16.msra.mxu0 0
  %2250 = vmatprep.subr.bf16.mxu0 0
  %2251 = vmatpush2.bf16.msra.mxu0 0
  %2252 = vmatprep.subr.bf16.mxu0 0
  %2253 = vmatpush2.bf16.msra.mxu0 0
  %2254 = vmatprep.mubr.bf16.mxu0 0
  %2255 = vmatmul.mubr.bf16.gmra.mxu0 %v2220
  %v2256 = vpop.f32.mrf.mxu0
  %v2257 = vadd.f32 0.0, %v2256
  %v2258 = vpop.f32.mrf.mxu0
  %v2259 = vpop.f32.mrf.mxu0
  %v2260 = vpop.f32.mrf.mxu0
  %2261 = vdwg.mxu0
  %v2262 = vpack.c.bf16 %v2257, %v2257
  %v2263 = vld [vmem:[%s79] sm:$0x3]
  %v2264 = vld [vmem:[%s81] sm:$0x1]
  %v2266 = vlaneseq
  %v2267 = vshrl.u32 %v2266, 7
  %v2268 = vsub.s32 0, %v2267
  %v2269 = vrot.slane %v2264, %v2268
  %vm2271 = vcmask 23552
  %v2273 = vsel %vm2271, %v2262, 0
  %vm2275 = vcmask 1040384
  %v2276 = vsel %vm2275, 4294967295, 65535
  %v2277 = vsel %vm558, %v2276, 0
  %v2279 = vand.u32 %v2263, %v2277
  %2281 = vmatprep.subr.bf16.mxu0 0
  %2282 = vmatpush1.bf16.msra.mxu0 0
  %2283 = vmatprep.subr.bf16.mxu0 0
  %2284 = vmatpush1.bf16.msra.mxu0 0
  %2285 = vmatprep.subr.bf16.mxu0 0
  %2286 = vmatpush1.bf16.msra.mxu0 0
  %2287 = vmatprep.subr.bf16.mxu0 0
  %2288 = vmatpush1.bf16.msra.mxu0 0
  %2289 = vmatprep.subr.bf16.mxu0 0
  %2290 = vmatpush1.bf16.msra.mxu0 0
  %2291 = vmatprep.subr.bf16.mxu0 0
  %2292 = vmatpush1.bf16.msra.mxu0 0
  %2293 = vmatprep.subr.bf16.mxu0 0
  %2294 = vmatpush1.bf16.msra.mxu0 0
  %2295 = vmatprep.subr.bf16.mxu0 0
  %2296 = vmatpush1.bf16.msra.mxu0 %v2279
  %2297 = vmatprep.subr.bf16.mxu0 0
  %2298 = vmatpush2.bf16.msra.mxu0 0
  %2299 = vmatprep.subr.bf16.mxu0 0
  %2300 = vmatpush2.bf16.msra.mxu0 0
  %2301 = vmatprep.subr.bf16.mxu0 0
  %2302 = vmatpush2.bf16.msra.mxu0 0
  %2303 = vmatprep.subr.bf16.mxu0 0
  %2304 = vmatpush2.bf16.msra.mxu0 0
  %2305 = vmatprep.subr.bf16.mxu0 0
  %2306 = vmatpush2.bf16.msra.mxu0 0
  %2307 = vmatprep.subr.bf16.mxu0 0
  %2308 = vmatpush2.bf16.msra.mxu0 0
  %2309 = vmatprep.subr.bf16.mxu0 0
  %2310 = vmatpush2.bf16.msra.mxu0 0
  %2311 = vmatprep.subr.bf16.mxu0 0
  %2312 = vmatpush2.bf16.msra.mxu0 0
  %2313 = vmatprep.mubr.bf16.mxu0 0
  %2314 = vmatmul.mubr.bf16.gmra.mxu0 %v2273
  %v2315 = vpop.f32.mrf.mxu0
  %v2316 = vadd.f32 %v2269, %v2315
  %v2317 = vpop.f32.mrf.mxu0
  %v2318 = vpop.f32.mrf.mxu0
  %v2319 = vpop.f32.mrf.mxu0
  %2320 = vdwg.mxu0
  %v2321 = vxor.u32 %v2316, 2147483648
  %v2322 = vmul.f32 %v2321, 1.442695
  %v2323 = vpow.pop %v2322
  %v2324 = vadd.f32 %v2323, 1.0
  %v2325 = vrcp.pop %v2324
  %v2326 = vmul.f32 1.0, %v2325
  %v2327 = vmul.f32 %v2316, %v2326
  %v2328 = vpack.c.bf16 %v2327, %v2327
  %v2329 = vld [vmem:[%s83] sm:$0xf]
  %v2330 = vld [vmem:[%s83 + $0x4] sm:$0xf]
  %v2331 = vld [vmem:[%s83 + $0x8] sm:$0xf]
  %v2332 = vld [vmem:[%s83 + $0xc] sm:$0xf]
  %v2333 = vld [vmem:[#allocation2] sm:$0x1]
  %v2335 = vlaneseq
  %v2336 = vshrl.u32 %v2335, 7
  %v2337 = vsub.s32 0, %v2336
  %v2338 = vrot.slane %v2333, %v2337
  %v2344 = vunpack.c.l.b16 %v2329
  %v2345 = vunpack.c.l.b16 %v2330
  %v2346 = vunpack.c.l.b16 %v2331
  %v2347 = vunpack.c.l.b16 %v2332
  %v2348 = vpack.c.b16 %v2345, %v2344
  %v2349 = vpack.c.b16 %v2347, %v2346
  %v2353 = vsel %vm492, %v2328, 0
  %2355 = vmatprep.subr.bf16.mxu0 0
  %2356 = vmatpush1.bf16.msra.mxu0 0
  %2357 = vmatprep.subr.bf16.mxu0 0
  %2358 = vmatpush1.bf16.msra.mxu0 0
  %2359 = vmatprep.subr.bf16.mxu0 0
  %2360 = vmatpush1.bf16.msra.mxu0 0
  %2361 = vmatprep.subr.bf16.mxu0 0
  %2362 = vmatpush1.bf16.msra.mxu0 0
  %2363 = vmatprep.subr.bf16.mxu0 0
  %2364 = vmatpush1.bf16.msra.mxu0 0
  %2365 = vmatprep.subr.bf16.mxu0 0
  %2366 = vmatpush1.bf16.msra.mxu0 0
  %2367 = vmatprep.subr.bf16.mxu0 0
  %2368 = vmatpush1.bf16.msra.mxu0 %v2349
  %2369 = vmatprep.subr.bf16.mxu0 0
  %2370 = vmatpush1.bf16.msra.mxu0 %v2348
  %2371 = vmatprep.subr.bf16.mxu0 0
  %2372 = vmatpush2.bf16.msra.mxu0 0
  %2373 = vmatprep.subr.bf16.mxu0 0
  %2374 = vmatpush2.bf16.msra.mxu0 0
  %2375 = vmatprep.subr.bf16.mxu0 0
  %2376 = vmatpush2.bf16.msra.mxu0 0
  %2377 = vmatprep.subr.bf16.mxu0 0
  %2378 = vmatpush2.bf16.msra.mxu0 0
  %2379 = vmatprep.subr.bf16.mxu0 0
  %2380 = vmatpush2.bf16.msra.mxu0 0
  %2381 = vmatprep.subr.bf16.mxu0 0
  %2382 = vmatpush2.bf16.msra.mxu0 0
  %2383 = vmatprep.subr.bf16.mxu0 0
  %2384 = vmatpush2.bf16.msra.mxu0 0
  %2385 = vmatprep.subr.bf16.mxu0 0
  %2386 = vmatpush2.bf16.msra.mxu0 0
  %2387 = vmatprep.mubr.bf16.mxu0 0
  %2388 = vmatmul.mubr.bf16.gmra.mxu0 %v2353
  %v2389 = vpop.f32.mrf.mxu0
  %v2390 = vadd.f32 %v2338, %v2389
  %v2391 = vpop.f32.mrf.mxu0
  %v2392 = vpop.f32.mrf.mxu0
  %v2393 = vpop.f32.mrf.mxu0
  %2394 = vdwg.mxu0
  %2395 = vst.msk [vmem:[%s87] sm:$0xff] %vm2271, %v2020
  %2396 = vst.msk [vmem:[%s87 + $0x8] sm:$0xff] %vm2271, %v2023
  %2397 = vst.msk [vmem:[%s89] sm:$0xff] %vm280, %v2205
  %2398 = vst.msk [vmem:[%s89 + $0x8] sm:$0xff] %vm280, %v2208
  %2399 = vst.msk [vmem:[%s89 + $0x10] sm:$0xff] %vm280, %v2213
  %vm2400 = vcmask 1024
  %2401 = vst.msk [vmem:[%s91] sm:$0x3] %vm2400, %v2390
  // Predicated region
  $region174: #{qgnn_forward.1} parent=0 // pred_check
    _
  $region175: #{qgnn_forward.1} parent=0 // pred_check_branch
    %2403 = sbr.rel (0) target = $region177
  $region176: #{qgnn_forward.1} parent=0 // pred_region
    _
  $region177: #{qgnn_forward.1} parent=0 // pred_fallthru
    _
  // Predicated region
  $region178: #{qgnn_forward.1} parent=0 // pred_check
    _
  $region179: #{qgnn_forward.1} parent=0 // pred_check_branch
    %2405 = sbr.rel (0) target = $region181
  $region180: #{qgnn_forward.1} parent=0 // pred_region
    _
  $region181: #{qgnn_forward.1} parent=0 // pred_fallthru
    _
  // Predicated region
  $region182: #{qgnn_forward.1} parent=0 // pred_check
    _
  $region183: #{qgnn_forward.1} parent=0 // pred_check_branch
    %2407 = sbr.rel (0) target = $region185
  $region184: #{qgnn_forward.1} parent=0 // pred_region
    _
  $region185: #{qgnn_forward.1} parent=0 // pred_fallthru
    _
  // Predicated region
  $region186: #{qgnn_forward.1} parent=0 // pred_check
    _
  $region187: #{qgnn_forward.1} parent=0 // pred_check_branch
    %2409 = sbr.rel (0) target = $region189
  $region188: #{qgnn_forward.1} parent=0 // pred_region
    _
  $region189: #{qgnn_forward.1} parent=0 // pred_fallthru
    _
  // Predicated region
  $region190: #{qgnn_forward.1} parent=0 // pred_check
    _
  $region191: #{qgnn_forward.1} parent=0 // pred_check_branch
    %2411 = sbr.rel (0) target = $region193
  $region192: #{qgnn_forward.1} parent=0 // pred_region
    _
  $region193: #{qgnn_forward.1} parent=0 // pred_fallthru
    _
  // Predicated region
  $region194: #{qgnn_forward.1} parent=0 // pred_check
    _
  $region195: #{qgnn_forward.1} parent=0 // pred_check_branch
    %2413 = sbr.rel (0) target = $region197
  $region196: #{qgnn_forward.1} parent=0 // pred_region
    _
  $region197: #{qgnn_forward.1} parent=0 // pred_fallthru
    _

</llo_original>
